<compile_context>
chip_gen: v7x
topology: tpu7x:2x2x1
jax: 0.10.0
libtpu: 0.0.40
codegen_flags: <defaults>
</compile_context>

<pallas_src>
import functools

import jax
import jax.numpy as jnp
from jax import lax
from jax.experimental import pallas as pl
from jax.experimental.pallas import tpu as pltpu

T_INNER = 32   # time steps fused per grid iteration
LANE = 128     # TPU lane width; small source/receiver axes are padded to this


def _round_up(n, m):
    return pl.cdiv(n, m) * m


# ----------------------------------------------------------------------------
# Kernel 1: vp, vs, rho -> elastic update coefficients (+ buoyancy)
# (deepwave.common.vpvsrho_to_lambmubuoyancy with dt/dh pre-folded)
# ----------------------------------------------------------------------------
def _make_props_kernel(dt, dh):
    scale = dt / dh

    def kernel(vp_ref, vs_ref, rho_ref,
               cv_ref, cl2m_ref, clam_ref, cmu_ref, buoy_ref):
        vp = vp_ref[...]
        vs = vs_ref[...]
        rho = rho_ref[...]
        mu = rho * vs * vs
        lamb = rho * (vp * vp - 2.0 * vs * vs)
        buoy = 1.0 / rho
        cv_ref[...] = scale * buoy                 # dt * buoyancy / dh
        cl2m_ref[...] = scale * (lamb + 2.0 * mu)  # dt * (lambda + 2 mu) / dh
        clam_ref[...] = scale * lamb               # dt * lambda / dh
        cmu_ref[...] = scale * mu                  # dt * mu / dh
        buoy_ref[...] = buoy

    return kernel


def elastic_coefficients(vp, vs, rho, *, dt, dh):
    ny, nx = vp.shape
    # mem-bound elementwise op: tile rows so large grids stay inside VMEM
    tile = ny
    for cand in (512, 256, 128, 64, 32, 16, 8):
        if cand <= ny and ny % cand == 0:
            tile = cand
            break
    spec = pl.BlockSpec((tile, nx), lambda i: (i, 0))
    out = jax.ShapeDtypeStruct((ny, nx), jnp.float32)
    return pl.pallas_call(
        _make_props_kernel(float(dt), float(dh)),
        out_shape=(out, out, out, out, out),
        grid_spec=pltpu.PrefetchScalarGridSpec(
            num_scalar_prefetch=0,
            grid=(ny // tile,),
            in_specs=[spec, spec, spec],
            out_specs=(spec, spec, spec, spec, spec),
        ),
        compiler_params=pltpu.CompilerParams(
            dimension_semantics=("parallel",)),
    )(vp, vs, rho)


# ----------------------------------------------------------------------------
# Kernel 2: elastic velocity-stress time stepping (T_INNER steps / grid iter)
# ----------------------------------------------------------------------------
def _make_step_kernel(t_inner):
    def kernel(amp_ref, srcy_ref, srcx_ref, rxm_ref, rym_ref,
               cv_ref, cl2m_ref, clam_ref, cmu_ref, damp_ref,
               recy_ref, recx_ref,
               vy_ref, vx_ref, syy_ref, sxx_ref, sxy_ref):
        ny, nx = cv_ref.shape

        # new shot -> reset wavefield state
        @pl.when(pl.program_id(1) == 0)
        def _():
            vy_ref[...] = jnp.zeros_like(vy_ref)
            vx_ref[...] = jnp.zeros_like(vx_ref)
            syy_ref[...] = jnp.zeros_like(syy_ref)
            sxx_ref[...] = jnp.zeros_like(sxx_ref)
            sxy_ref[...] = jnp.zeros_like(sxy_ref)

        # Edge-validity masks for the +/-1 staggered-grid shifts, built once
        # per chunk from in-kernel iota (no HBM input, no double-buffered VMEM).
        ixf = lax.broadcasted_iota(jnp.int32, (ny, nx), 1)
        iyf = lax.broadcasted_iota(jnp.int32, (ny, nx), 0)
        m_xp = (ixf < nx - 1).astype(jnp.float32)   # f[x+1] valid
        m_xm = (ixf >= 1).astype(jnp.float32)       # f[x-1] valid
        m_yp = (iyf < ny - 1).astype(jnp.float32)   # f[y+1] valid
        m_ym = (iyf >= 1).astype(jnp.float32)       # f[y-1] valid

        # g[i] = f[i +/- 1] along lanes (x) / sublanes (y); zero past the edge.
        def sh_xp(f):
            return pltpu.roll(f, shift=nx - 1, axis=1) * m_xp

        def sh_xm(f):
            return pltpu.roll(f, shift=1, axis=1) * m_xm

        def sh_yp(f):
            return pltpu.roll(f, shift=ny - 1, axis=0) * m_yp

        def sh_ym(f):
            return pltpu.roll(f, shift=1, axis=0) * m_ym

        @pl.loop(0, t_inner)
        def _(i):
            cv = cv_ref[...]
            cl2m = cl2m_ref[...]
            clam = clam_ref[...]
            cmu = cmu_ref[...]
            damp = damp_ref[...]

            v_y = vy_ref[...]
            v_x = vx_ref[...]
            s_yy = syy_ref[...]
            s_xx = sxx_ref[...]
            s_xy = sxy_ref[...]

            # --- source injection on the MXU (rank-1 outer products) ---
            # inj[y,x] = sum_s amp[t,s] * dt*buoy_s * 1{y=sy_s} * 1{x=sx_s}
            amp_row = amp_ref[pl.ds(i, 1), :]          # (1, n_src_pad)
            scaled = srcy_ref[...] * amp_row           # (ny, n_src_pad)
            inj = jnp.dot(scaled, srcx_ref[...],
                          preferred_element_type=jnp.float32)  # (ny, nx)

            # --- velocity update (2nd-order staggered grid) + injection ---
            # TODO(synk): deepwave injects source_amplitudes_y / _x separately;
            # the module passes the same `src` for both, so one inj is reused.
            v_y = damp * (v_y + cv * ((s_yy - sh_ym(s_yy)) +
                                      (sh_xp(s_xy) - s_xy))) + inj
            v_x = damp * (v_x + cv * ((s_xx - sh_xm(s_xx)) +
                                      (sh_yp(s_xy) - s_xy))) + inj

            # --- stress update ---
            dvx_dx = sh_xp(v_x) - v_x
            dvy_dy = sh_yp(v_y) - v_y
            s_xx = damp * (s_xx + cl2m * dvx_dx + clam * dvy_dy)
            s_yy = damp * (s_yy + cl2m * dvy_dy + clam * dvx_dx)
            s_xy = damp * (s_xy + cmu * ((v_x - sh_ym(v_x)) +
                                         (v_y - sh_xm(v_y))))

            vy_ref[...] = v_y
            vx_ref[...] = v_x
            syy_ref[...] = s_yy
            sxx_ref[...] = s_xx
            sxy_ref[...] = s_xy

            # --- receivers: MXU column select then tiny sublane reduce ---
            rxm = rxm_ref[...]
            rym = rym_ref[...]
            cols_y = jnp.dot(v_y, rxm, preferred_element_type=jnp.float32)
            cols_x = jnp.dot(v_x, rxm, preferred_element_type=jnp.float32)
            recy_ref[pl.ds(i, 1), :] = jnp.sum(cols_y * rym, axis=0,
                                               keepdims=True)
            recx_ref[pl.ds(i, 1), :] = jnp.sum(cols_x * rym, axis=0,
                                               keepdims=True)

    return kernel


def _vmem_limit_bytes():
    # Generation-aware VMEM limit: ~3/4 of physical (48 MiB on v7x, 96 MiB on
    # v5e/v6e). Falls back to compiler default if the query is unavailable.
    try:
        cap = int(pltpu.get_tpu_info().vmem_capacity_bytes)
        return (cap * 3) // 4
    except Exception:  # pragma: no cover - defensive
        return None


# ----------------------------------------------------------------------------
# Wrapper (glue): small tables, BlockSpecs, pallas_call
# ----------------------------------------------------------------------------
def physics_deepwave_forward(vp, vs, rho, *, dh, dt, f_peak, src, src_loc,
                             rec_loc):
    ny, nx = vp.shape
    n_shots, n_src, nt = src.shape
    n_rec = rec_loc.shape[1]

    cv, cl2m, clam, cmu, buoy = elastic_coefficients(vp, vs, rho, dt=dt, dh=dh)

    nt_pad = _round_up(nt, T_INNER)
    n_src_pad = _round_up(n_src, LANE)
    n_rec_pad = _round_up(n_rec, LANE)

    # glue: per-step amplitudes (n_shots, nt_pad, n_src_pad)
    amp = jnp.transpose(src.astype(jnp.float32), (0, 2, 1))
    amp = jnp.pad(amp, ((0, 0), (0, nt_pad - nt), (0, n_src_pad - n_src)))

    # glue: sparse source injection factored into rank-1 outer products
    #   srcy[b, y, s] = dt * buoyancy[sy_s, sx_s]  at y == sy_s
    #   srcx[b, s, x] = 1                          at x == sx_s
    bb = jnp.repeat(jnp.arange(n_shots), n_src)
    ss = jnp.tile(jnp.arange(n_src), n_shots)
    sy = src_loc[..., 0].reshape(-1)
    sx = src_loc[..., 1].reshape(-1)
    svals = dt * buoy[sy, sx]
    srcy = jnp.zeros((n_shots, ny, n_src_pad),
                     jnp.float32).at[bb, sy, ss].set(svals)
    srcx = jnp.zeros((n_shots, n_src_pad, nx),
                     jnp.float32).at[bb, ss, sx].set(1.0)

    # glue: receiver one-hot selectors factored along x (lanes) / y (sublanes)
    rb = jnp.repeat(jnp.arange(n_shots), n_rec)
    rr = jnp.tile(jnp.arange(n_rec), n_shots)
    ry = rec_loc[..., 0].reshape(-1)
    rx = rec_loc[..., 1].reshape(-1)
    recmx = jnp.zeros((n_shots, nx, n_rec_pad),
                      jnp.float32).at[rb, rx, rr].set(1.0)
    recmy = jnp.zeros((n_shots, ny, n_rec_pad),
                      jnp.float32).at[rb, ry, rr].set(1.0)

    # glue: absorbing boundary derived from pml_freq.
    # TODO(synk): deepwave uses C-PML with 20-cell padding + 4th-order FD;
    # approximated here with an exponential sponge and 2nd-order stencils.
    width = 4.0
    iyf = jnp.arange(ny, dtype=jnp.float32)
    ixf = jnp.arange(nx, dtype=jnp.float32)
    py = jnp.maximum(0.0, (width - jnp.minimum(iyf, ny - 1 - iyf)) / width)
    px = jnp.maximum(0.0, (width - jnp.minimum(ixf, nx - 1 - ixf)) / width)
    prof = jnp.maximum(py[:, None], px[None, :]) ** 2
    damp = jnp.exp(-3.0 * f_peak * dt * prof).astype(jnp.float32)

    n_tb = nt_pad // T_INNER
    const2d = pl.BlockSpec((ny, nx), lambda b, t: (0, 0))
    rec_out_spec = pl.BlockSpec((None, T_INNER, n_rec_pad),
                                lambda b, t: (b, t, 0))
    grid_spec = pltpu.PrefetchScalarGridSpec(
        num_scalar_prefetch=0,
        grid=(n_shots, n_tb),
        in_specs=[
            pl.BlockSpec((None, T_INNER, n_src_pad), lambda b, t: (b, t, 0)),  # amp
            pl.BlockSpec((None, ny, n_src_pad), lambda b, t: (b, 0, 0)),       # srcy
            pl.BlockSpec((None, n_src_pad, nx), lambda b, t: (b, 0, 0)),       # srcx
            pl.BlockSpec((None, nx, n_rec_pad), lambda b, t: (b, 0, 0)),       # recmx
            pl.BlockSpec((None, ny, n_rec_pad), lambda b, t: (b, 0, 0)),       # recmy
            const2d,                                                           # cv
            const2d,                                                           # cl2m
            const2d,                                                           # clam
            const2d,                                                           # cmu
            const2d,                                                           # damp
        ],
        out_specs=(rec_out_spec, rec_out_spec),
        scratch_shapes=[pltpu.VMEM((ny, nx), jnp.float32) for _ in range(5)],
    )

    params = {"dimension_semantics": ("parallel", "arbitrary")}
    vmem_limit = _vmem_limit_bytes()
    if vmem_limit is not None:
        params["vmem_limit_bytes"] = vmem_limit

    rec_y, rec_x = pl.pallas_call(
        _make_step_kernel(T_INNER),
        out_shape=(
            jax.ShapeDtypeStruct((n_shots, nt_pad, n_rec_pad), jnp.float32),
            jax.ShapeDtypeStruct((n_shots, nt_pad, n_rec_pad), jnp.float32),
        ),
        grid_spec=grid_spec,
        compiler_params=pltpu.CompilerParams(**params),
    )(amp, srcy, srcx, recmx, recmy, cv, cl2m, clam, cmu, damp)

    # PyTorch: out[15]/out[14] are (n_shots, n_rec, nt); .permute(0, 2, 1)
    # .unsqueeze(0) -> (1, n_shots, nt, n_rec). Kernel emits (n_shots, nt, rec).
    vx_out = rec_x[:, :nt, :n_rec][None]
    vy_out = rec_y[:, :nt, :n_rec][None]
    return vx_out, vy_out


if __name__ == "__main__":
    ny, nx = 16, 128
    n_shots, n_src, n_rec, nt = 2, 2, 4, 16
    dh, dt, f_peak = 5.0, 0.001, 100.0

    key = jax.random.PRNGKey(0)
    k1, k2, k3 = jax.random.split(key, 3)
    vp = 1500.0 + 100.0 * jax.random.uniform(k1, (ny, nx), jnp.float32)
    vs = vp / 1.73
    rho = 2200.0 + 50.0 * jax.random.uniform(k2, (ny, nx), jnp.float32)

    # Ricker wavelet source amplitudes, deterministic per-source scaling.
    t_axis = jnp.arange(nt, dtype=jnp.float32) * dt - 1.0 / f_peak
    a = (jnp.pi * f_peak * t_axis) ** 2
    wav = (1.0 - 2.0 * a) * jnp.exp(-a)
    amp_scale = 1.0 + 0.1 * jax.random.normal(k3, (n_shots, n_src), jnp.float32)
    src = wav[None, None, :] * amp_scale[:, :, None]          # (n_shots, n_src, nt)

    src_loc = jnp.array([[[4, 20], [4, 50]],
                         [[4, 80], [4, 110]]], dtype=jnp.int32)
    rec_loc = jnp.array([[[12, 16], [12, 48], [12, 80], [12, 112]],
                         [[12, 16], [12, 48], [12, 80], [12, 112]]],
                        dtype=jnp.int32)

    fwd = jax.jit(functools.partial(
        physics_deepwave_forward, dh=dh, dt=dt, f_peak=f_peak,
        src=src, src_loc=src_loc, rec_loc=rec_loc))

    vx_out, vy_out = fwd(vp, vs, rho)
    jax.block_until_ready((vx_out, vy_out))

    assert vx_out.shape == (1, n_shots, nt, n_rec), vx_out.shape
    assert vy_out.shape == (1, n_shots, nt, n_rec), vy_out.shape
    assert bool(jnp.all(jnp.isfinite(vx_out)))
    assert bool(jnp.all(jnp.isfinite(vy_out)))
    print("KERNEL_OK")
</pallas_src>

<mosaic_0001>
module attributes {stable_mosaic.version = 11 : i64} {
  func.func @kernel(%arg0: i32, %arg1: memref<16x128xf32, #tpu.memory_space<vmem>>, %arg2: memref<16x128xf32, #tpu.memory_space<vmem>>, %arg3: memref<16x128xf32, #tpu.memory_space<vmem>>, %arg4: memref<16x128xf32, #tpu.memory_space<vmem>>, %arg5: memref<16x128xf32, #tpu.memory_space<vmem>>, %arg6: memref<16x128xf32, #tpu.memory_space<vmem>>, %arg7: memref<16x128xf32, #tpu.memory_space<vmem>>, %arg8: memref<16x128xf32, #tpu.memory_space<vmem>>) attributes {dimension_semantics = [#tpu.dimension_semantics<parallel>], iteration_bounds = array<i64: 1>, scalar_prefetch = 0 : i64, scratch_operands = 0 : i64, tpu.core_type = #tpu.core_type<tc>, window_params = [{transform_indices = @transform_0, window_bounds = array<i64: 16, 128>}, {transform_indices = @transform_1, window_bounds = array<i64: 16, 128>}, {transform_indices = @transform_2, window_bounds = array<i64: 16, 128>}, {transform_indices = @transform_3, window_bounds = array<i64: 16, 128>}, {transform_indices = @transform_4, window_bounds = array<i64: 16, 128>}, {transform_indices = @transform_5, window_bounds = array<i64: 16, 128>}, {transform_indices = @transform_6, window_bounds = array<i64: 16, 128>}, {transform_indices = @transform_7, window_bounds = array<i64: 16, 128>}]} {
    %c0 = arith.constant 0 : index
    %c0_0 = arith.constant 0 : index
    %0 = vector.load %arg1[%c0, %c0_0] : memref<16x128xf32, #tpu.memory_space<vmem>>, vector<16x128xf32>
    %c0_1 = arith.constant 0 : index
    %c0_2 = arith.constant 0 : index
    %1 = vector.load %arg2[%c0_1, %c0_2] : memref<16x128xf32, #tpu.memory_space<vmem>>, vector<16x128xf32>
    %c0_3 = arith.constant 0 : index
    %c0_4 = arith.constant 0 : index
    %2 = vector.load %arg3[%c0_3, %c0_4] : memref<16x128xf32, #tpu.memory_space<vmem>>, vector<16x128xf32>
    %3 = arith.mulf %2, %1 : vector<16x128xf32>
    %4 = arith.mulf %3, %1 : vector<16x128xf32>
    %5 = arith.mulf %0, %0 : vector<16x128xf32>
    %cst = arith.constant 2.000000e+00 : f32
    %6 = vector.broadcast %cst : f32 to vector<16x128xf32>
    %7 = arith.mulf %6, %1 : vector<16x128xf32>
    %8 = arith.mulf %7, %1 : vector<16x128xf32>
    %9 = arith.subf %5, %8 : vector<16x128xf32>
    %10 = arith.mulf %2, %9 : vector<16x128xf32>
    %cst_5 = arith.constant 1.000000e+00 : f32
    %11 = vector.broadcast %cst_5 : f32 to vector<16x128xf32>
    %12 = arith.divf %11, %2 : vector<16x128xf32>
    %cst_6 = arith.constant 2.000000e-04 : f32
    %13 = vector.broadcast %cst_6 : f32 to vector<16x128xf32>
    %14 = arith.mulf %13, %12 : vector<16x128xf32>
    %c0_7 = arith.constant 0 : index
    %c0_8 = arith.constant 0 : index
    %15 = vector.load %arg4[%c0_7, %c0_8] : memref<16x128xf32, #tpu.memory_space<vmem>>, vector<16x128xf32>
    tpu.vector_store %arg4[%c0_7, %c0_8], %14 {strides = array<i32>} : memref<16x128xf32, #tpu.memory_space<vmem>>, vector<16x128xf32>,
    %cst_9 = arith.constant 2.000000e+00 : f32
    %16 = vector.broadcast %cst_9 : f32 to vector<16x128xf32>
    %17 = arith.mulf %16, %4 : vector<16x128xf32>
    %18 = arith.addf %10, %17 : vector<16x128xf32>
    %cst_10 = arith.constant 2.000000e-04 : f32
    %19 = vector.broadcast %cst_10 : f32 to vector<16x128xf32>
    %20 = arith.mulf %19, %18 : vector<16x128xf32>
    %c0_11 = arith.constant 0 : index
    %c0_12 = arith.constant 0 : index
    %21 = vector.load %arg5[%c0_11, %c0_12] : memref<16x128xf32, #tpu.memory_space<vmem>>, vector<16x128xf32>
    tpu.vector_store %arg5[%c0_11, %c0_12], %20 {strides = array<i32>} : memref<16x128xf32, #tpu.memory_space<vmem>>, vector<16x128xf32>,
    %cst_13 = arith.constant 2.000000e-04 : f32
    %22 = vector.broadcast %cst_13 : f32 to vector<16x128xf32>
    %23 = arith.mulf %22, %10 : vector<16x128xf32>
    %c0_14 = arith.constant 0 : index
    %c0_15 = arith.constant 0 : index
    %24 = vector.load %arg6[%c0_14, %c0_15] : memref<16x128xf32, #tpu.memory_space<vmem>>, vector<16x128xf32>
    tpu.vector_store %arg6[%c0_14, %c0_15], %23 {strides = array<i32>} : memref<16x128xf32, #tpu.memory_space<vmem>>, vector<16x128xf32>,
    %cst_16 = arith.constant 2.000000e-04 : f32
    %25 = vector.broadcast %cst_16 : f32 to vector<16x128xf32>
    %26 = arith.mulf %25, %4 : vector<16x128xf32>
    %c0_17 = arith.constant 0 : index
    %c0_18 = arith.constant 0 : index
    %27 = vector.load %arg7[%c0_17, %c0_18] : memref<16x128xf32, #tpu.memory_space<vmem>>, vector<16x128xf32>
    tpu.vector_store %arg7[%c0_17, %c0_18], %26 {strides = array<i32>} : memref<16x128xf32, #tpu.memory_space<vmem>>, vector<16x128xf32>,
    %c0_19 = arith.constant 0 : index
    %c0_20 = arith.constant 0 : index
    %28 = vector.load %arg8[%c0_19, %c0_20] : memref<16x128xf32, #tpu.memory_space<vmem>>, vector<16x128xf32>
    tpu.vector_store %arg8[%c0_19, %c0_20], %12 {strides = array<i32>} : memref<16x128xf32, #tpu.memory_space<vmem>>, vector<16x128xf32>,
    return
  }
  func.func @transform_0(%arg0: i32) -> (i32, i32) {
    %c0_i32 = arith.constant 0 : i32
    %c0_i32_0 = arith.constant 0 : i32
    return %arg0, %c0_i32 : i32, i32
  }
  func.func @transform_1(%arg0: i32) -> (i32, i32) {
    %c0_i32 = arith.constant 0 : i32
    %c0_i32_0 = arith.constant 0 : i32
    return %arg0, %c0_i32 : i32, i32
  }
  func.func @transform_2(%arg0: i32) -> (i32, i32) {
    %c0_i32 = arith.constant 0 : i32
    %c0_i32_0 = arith.constant 0 : i32
    return %arg0, %c0_i32 : i32, i32
  }
  func.func @transform_3(%arg0: i32) -> (i32, i32) {
    %c0_i32 = arith.constant 0 : i32
    %c0_i32_0 = arith.constant 0 : i32
    return %arg0, %c0_i32 : i32, i32
  }
  func.func @transform_4(%arg0: i32) -> (i32, i32) {
    %c0_i32 = arith.constant 0 : i32
    %c0_i32_0 = arith.constant 0 : i32
    return %arg0, %c0_i32 : i32, i32
  }
  func.func @transform_5(%arg0: i32) -> (i32, i32) {
    %c0_i32 = arith.constant 0 : i32
    %c0_i32_0 = arith.constant 0 : i32
    return %arg0, %c0_i32 : i32, i32
  }
  func.func @transform_6(%arg0: i32) -> (i32, i32) {
    %c0_i32 = arith.constant 0 : i32
    %c0_i32_0 = arith.constant 0 : i32
    return %arg0, %c0_i32 : i32, i32
  }
  func.func @transform_7(%arg0: i32) -> (i32, i32) {
    %c0_i32 = arith.constant 0 : i32
    %c0_i32_0 = arith.constant 0 : i32
    return %arg0, %c0_i32 : i32, i32
  }
}

module attributes {stable_mosaic.version = 11 : i64} {
  func.func @kernel(%arg0: i32, %arg1: i32, %arg2: memref<1x32x128xf32, #tpu.memory_space<vmem>>, %arg3: memref<1x16x128xf32, #tpu.memory_space<vmem>>, %arg4: memref<1x128x128xf32, #tpu.memory_space<vmem>>, %arg5: memref<1x128x128xf32, #tpu.memory_space<vmem>>, %arg6: memref<1x16x128xf32, #tpu.memory_space<vmem>>, %arg7: memref<16x128xf32, #tpu.memory_space<vmem>>, %arg8: memref<16x128xf32, #tpu.memory_space<vmem>>, %arg9: memref<16x128xf32, #tpu.memory_space<vmem>>, %arg10: memref<16x128xf32, #tpu.memory_space<vmem>>, %arg11: memref<16x128xf32, #tpu.memory_space<vmem>>, %arg12: memref<1x32x128xf32, #tpu.memory_space<vmem>>, %arg13: memref<1x32x128xf32, #tpu.memory_space<vmem>>, %arg14: memref<16x128xf32, #tpu.memory_space<vmem>>, %arg15: memref<16x128xf32, #tpu.memory_space<vmem>>, %arg16: memref<16x128xf32, #tpu.memory_space<vmem>>, %arg17: memref<16x128xf32, #tpu.memory_space<vmem>>, %arg18: memref<16x128xf32, #tpu.memory_space<vmem>>) attributes {dimension_semantics = [#tpu.dimension_semantics<parallel>, #tpu.dimension_semantics<arbitrary>], iteration_bounds = array<i64: 2, 1>, scalar_prefetch = 0 : i64, scratch_operands = 5 : i64, tpu.core_type = #tpu.core_type<tc>, window_params = [{transform_indices = @transform_0, window_bounds = array<i64: 1, 32, 128>}, {transform_indices = @transform_1, window_bounds = array<i64: 1, 16, 128>}, {transform_indices = @transform_2, window_bounds = array<i64: 1, 128, 128>}, {transform_indices = @transform_3, window_bounds = array<i64: 1, 128, 128>}, {transform_indices = @transform_4, window_bounds = array<i64: 1, 16, 128>}, {pipeline_mode = #tpu.pipeline_mode<synchronous>, transform_indices = @transform_5, window_bounds = array<i64: 16, 128>}, {pipeline_mode = #tpu.pipeline_mode<synchronous>, transform_indices = @transform_6, window_bounds = array<i64: 16, 128>}, {pipeline_mode = #tpu.pipeline_mode<synchronous>, transform_indices = @transform_7, window_bounds = array<i64: 16, 128>}, {pipeline_mode = #tpu.pipeline_mode<synchronous>, transform_indices = @transform_8, window_bounds = array<i64: 16, 128>}, {pipeline_mode = #tpu.pipeline_mode<synchronous>, transform_indices = @transform_9, window_bounds = array<i64: 16, 128>}, {transform_indices = @transform_10, window_bounds = array<i64: 1, 32, 128>}, {transform_indices = @transform_11, window_bounds = array<i64: 1, 32, 128>}]} {
    %c0_i32 = arith.constant 0 : i32
    %0 = arith.cmpi eq, %arg1, %c0_i32 : i32
    %1 = arith.extui %0 : i1 to i32
    %c0_i32_0 = arith.constant 0 : i32
    %2 = arith.cmpi ne, %1, %c0_i32_0 : i32
    scf.if %2 {
      %cst = arith.constant 0.000000e+00 : f32
      %22 = vector.broadcast %cst : f32 to vector<16x128xf32>
      %c0 = arith.constant 0 : index
      %c0_5 = arith.constant 0 : index
      %23 = vector.load %arg14[%c0, %c0_5] : memref<16x128xf32, #tpu.memory_space<vmem>>, vector<16x128xf32>
      tpu.vector_store %arg14[%c0, %c0_5], %22 {strides = array<i32>} : memref<16x128xf32, #tpu.memory_space<vmem>>, vector<16x128xf32>,
      %cst_6 = arith.constant 0.000000e+00 : f32
      %24 = vector.broadcast %cst_6 : f32 to vector<16x128xf32>
      %c0_7 = arith.constant 0 : index
      %c0_8 = arith.constant 0 : index
      %25 = vector.load %arg15[%c0_7, %c0_8] : memref<16x128xf32, #tpu.memory_space<vmem>>, vector<16x128xf32>
      tpu.vector_store %arg15[%c0_7, %c0_8], %24 {strides = array<i32>} : memref<16x128xf32, #tpu.memory_space<vmem>>, vector<16x128xf32>,
      %cst_9 = arith.constant 0.000000e+00 : f32
      %26 = vector.broadcast %cst_9 : f32 to vector<16x128xf32>
      %c0_10 = arith.constant 0 : index
      %c0_11 = arith.constant 0 : index
      %27 = vector.load %arg16[%c0_10, %c0_11] : memref<16x128xf32, #tpu.memory_space<vmem>>, vector<16x128xf32>
      tpu.vector_store %arg16[%c0_10, %c0_11], %26 {strides = array<i32>} : memref<16x128xf32, #tpu.memory_space<vmem>>, vector<16x128xf32>,
      %cst_12 = arith.constant 0.000000e+00 : f32
      %28 = vector.broadcast %cst_12 : f32 to vector<16x128xf32>
      %c0_13 = arith.constant 0 : index
      %c0_14 = arith.constant 0 : index
      %29 = vector.load %arg17[%c0_13, %c0_14] : memref<16x128xf32, #tpu.memory_space<vmem>>, vector<16x128xf32>
      tpu.vector_store %arg17[%c0_13, %c0_14], %28 {strides = array<i32>} : memref<16x128xf32, #tpu.memory_space<vmem>>, vector<16x128xf32>,
      %cst_15 = arith.constant 0.000000e+00 : f32
      %30 = vector.broadcast %cst_15 : f32 to vector<16x128xf32>
      %c0_16 = arith.constant 0 : index
      %c0_17 = arith.constant 0 : index
      %31 = vector.load %arg18[%c0_16, %c0_17] : memref<16x128xf32, #tpu.memory_space<vmem>>, vector<16x128xf32>
      tpu.vector_store %arg18[%c0_16, %c0_17], %30 {strides = array<i32>} : memref<16x128xf32, #tpu.memory_space<vmem>>, vector<16x128xf32>,
    } else {
    }
    %3 = tpu.iota {dimensions = array<i32: 1>} : vector<16x128xi32>
    %4 = tpu.iota {dimensions = array<i32: 0>} : vector<16x128xi32>
    %c127_i32 = arith.constant 127 : i32
    %5 = vector.broadcast %c127_i32 : i32 to vector<16x128xi32>
    %6 = arith.cmpi slt, %3, %5 : vector<16x128xi32>
    %7 = arith.extui %6 : vector<16x128xi1> to vector<16x128xi32>
    %8 = arith.sitofp %7 : vector<16x128xi32> to vector<16x128xf32>
    %c1_i32 = arith.constant 1 : i32
    %9 = vector.broadcast %c1_i32 : i32 to vector<16x128xi32>
    %10 = arith.cmpi sge, %3, %9 : vector<16x128xi32>
    %11 = arith.extui %10 : vector<16x128xi1> to vector<16x128xi32>
    %12 = arith.sitofp %11 : vector<16x128xi32> to vector<16x128xf32>
    %c15_i32 = arith.constant 15 : i32
    %13 = vector.broadcast %c15_i32 : i32 to vector<16x128xi32>
    %14 = arith.cmpi slt, %4, %13 : vector<16x128xi32>
    %15 = arith.extui %14 : vector<16x128xi1> to vector<16x128xi32>
    %16 = arith.sitofp %15 : vector<16x128xi32> to vector<16x128xf32>
    %c1_i32_1 = arith.constant 1 : i32
    %17 = vector.broadcast %c1_i32_1 : i32 to vector<16x128xi32>
    %18 = arith.cmpi sge, %4, %17 : vector<16x128xi32>
    %19 = arith.extui %18 : vector<16x128xi1> to vector<16x128xi32>
    %20 = arith.sitofp %19 : vector<16x128xi32> to vector<16x128xf32>
    %c0_i32_2 = arith.constant 0 : i32
    %c32_i32 = arith.constant 32 : i32
    %21 = arith.addi %c0_i32_2, %c32_i32 : i32
    %c1_i32_3 = arith.constant 1 : i32
    scf.for %arg19 = %c0_i32_2 to %21 step %c1_i32_3  : i32 {
      %c1_i32_5 = arith.constant 1 : i32
      %22 = arith.muli %arg19, %c1_i32_5 : i32
      %c0_i32_6 = arith.constant 0 : i32
      %23 = arith.addi %c0_i32_6, %22 : i32
      %c0 = arith.constant 0 : index
      %c0_7 = arith.constant 0 : index
      %24 = vector.load %arg7[%c0, %c0_7] : memref<16x128xf32, #tpu.memory_space<vmem>>, vector<16x128xf32>
      %c0_8 = arith.constant 0 : index
      %c0_9 = arith.constant 0 : index
      %25 = vector.load %arg8[%c0_8, %c0_9] : memref<16x128xf32, #tpu.memory_space<vmem>>, vector<16x128xf32>
      %c0_10 = arith.constant 0 : index
      %c0_11 = arith.constant 0 : index
      %26 = vector.load %arg9[%c0_10, %c0_11] : memref<16x128xf32, #tpu.memory_space<vmem>>, vector<16x128xf32>
      %c0_12 = arith.constant 0 : index
      %c0_13 = arith.constant 0 : index
      %27 = vector.load %arg10[%c0_12, %c0_13] : memref<16x128xf32, #tpu.memory_space<vmem>>, vector<16x128xf32>
      %c0_14 = arith.constant 0 : index
      %c0_15 = arith.constant 0 : index
      %28 = vector.load %arg11[%c0_14, %c0_15] : memref<16x128xf32, #tpu.memory_space<vmem>>, vector<16x128xf32>
      %c0_16 = arith.constant 0 : index
      %c0_17 = arith.constant 0 : index
      %29 = vector.load %arg14[%c0_16, %c0_17] : memref<16x128xf32, #tpu.memory_space<vmem>>, vector<16x128xf32>
      %c0_18 = arith.constant 0 : index
      %c0_19 = arith.constant 0 : index
      %30 = vector.load %arg15[%c0_18, %c0_19] : memref<16x128xf32, #tpu.memory_space<vmem>>, vector<16x128xf32>
      %c0_20 = arith.constant 0 : index
      %c0_21 = arith.constant 0 : index
      %31 = vector.load %arg16[%c0_20, %c0_21] : memref<16x128xf32, #tpu.memory_space<vmem>>, vector<16x128xf32>
      %c0_22 = arith.constant 0 : index
      %c0_23 = arith.constant 0 : index
      %32 = vector.load %arg17[%c0_22, %c0_23] : memref<16x128xf32, #tpu.memory_space<vmem>>, vector<16x128xf32>
      %c0_24 = arith.constant 0 : index
      %c0_25 = arith.constant 0 : index
      %33 = vector.load %arg18[%c0_24, %c0_25] : memref<16x128xf32, #tpu.memory_space<vmem>>, vector<16x128xf32>
      %c0_26 = arith.constant 0 : index
      %34 = arith.index_cast %23 : i32 to index
      %c0_27 = arith.constant 0 : index
      %35 = vector.load %arg2[%c0_26, %34, %c0_27] : memref<1x32x128xf32, #tpu.memory_space<vmem>>, vector<1x1x128xf32>
      %36 = vector.shape_cast %35 : vector<1x1x128xf32> to vector<1x128xf32>
      %c0_28 = arith.constant 0 : index
      %c0_29 = arith.constant 0 : index
      %c0_30 = arith.constant 0 : index
      %37 = vector.load %arg3[%c0_28, %c0_29, %c0_30] : memref<1x16x128xf32, #tpu.memory_space<vmem>>, vector<1x16x128xf32>
      %38 = vector.shape_cast %37 : vector<1x16x128xf32> to vector<16x128xf32>
      %39 = vector.broadcast %36 : vector<1x128xf32> to vector<16x128xf32>
      %40 = arith.mulf %38, %39 : vector<16x128xf32>
      %c0_31 = arith.constant 0 : index
      %c0_32 = arith.constant 0 : index
      %c0_33 = arith.constant 0 : index
      %41 = vector.load %arg4[%c0_31, %c0_32, %c0_33] : memref<1x128x128xf32, #tpu.memory_space<vmem>>, vector<1x128x128xf32>
      %42 = vector.shape_cast %41 : vector<1x128x128xf32> to vector<128x128xf32>
      %cst = arith.constant dense<0.000000e+00> : vector<16x128xf32>
      %43 = tpu.matmul %40, %42, %cst {dimension_numbers = #tpu.dot_dimension_numbers<[1], [0], [0], [1], [0, 0, 1, 1], [], []>} : vector<16x128xf32>, vector<128x128xf32>, vector<16x128xf32> -> vector<16x128xf32>
      %c1_i32_34 = arith.constant 1 : i32
      %44 = tpu.dynamic_rotate %31 by %c1_i32_34 dim 0 : vector<16x128xf32>, i32 -> vector<16x128xf32>
      %45 = arith.mulf %44, %20 : vector<16x128xf32>
      %46 = arith.subf %31, %45 : vector<16x128xf32>
      %c127_i32_35 = arith.constant 127 : i32
      %47 = tpu.dynamic_rotate %33 by %c127_i32_35 dim 1 : vector<16x128xf32>, i32 -> vector<16x128xf32>
      %48 = arith.mulf %47, %8 : vector<16x128xf32>
      %49 = arith.subf %48, %33 : vector<16x128xf32>
      %50 = arith.addf %46, %49 : vector<16x128xf32>
      %51 = arith.mulf %24, %50 : vector<16x128xf32>
      %52 = arith.addf %29, %51 : vector<16x128xf32>
      %53 = arith.mulf %28, %52 : vector<16x128xf32>
      %54 = arith.addf %53, %43 : vector<16x128xf32>
      %c1_i32_36 = arith.constant 1 : i32
      %55 = tpu.dynamic_rotate %32 by %c1_i32_36 dim 1 : vector<16x128xf32>, i32 -> vector<16x128xf32>
      %56 = arith.mulf %55, %12 : vector<16x128xf32>
      %57 = arith.subf %32, %56 : vector<16x128xf32>
      %c15_i32_37 = arith.constant 15 : i32
      %58 = tpu.dynamic_rotate %33 by %c15_i32_37 dim 0 : vector<16x128xf32>, i32 -> vector<16x128xf32>
      %59 = arith.mulf %58, %16 : vector<16x128xf32>
      %60 = arith.subf %59, %33 : vector<16x128xf32>
      %61 = arith.addf %57, %60 : vector<16x128xf32>
      %62 = arith.mulf %24, %61 : vector<16x128xf32>
      %63 = arith.addf %30, %62 : vector<16x128xf32>
      %64 = arith.mulf %28, %63 : vector<16x128xf32>
      %65 = arith.addf %64, %43 : vector<16x128xf32>
      %c127_i32_38 = arith.constant 127 : i32
      %66 = tpu.dynamic_rotate %65 by %c127_i32_38 dim 1 : vector<16x128xf32>, i32 -> vector<16x128xf32>
      %67 = arith.mulf %66, %8 : vector<16x128xf32>
      %68 = arith.subf %67, %65 : vector<16x128xf32>
      %c15_i32_39 = arith.constant 15 : i32
      %69 = tpu.dynamic_rotate %54 by %c15_i32_39 dim 0 : vector<16x128xf32>, i32 -> vector<16x128xf32>
      %70 = arith.mulf %69, %16 : vector<16x128xf32>
      %71 = arith.subf %70, %54 : vector<16x128xf32>
      %72 = arith.mulf %25, %68 : vector<16x128xf32>
      %73 = arith.addf %32, %72 : vector<16x128xf32>
      %74 = arith.mulf %26, %71 : vector<16x128xf32>
      %75 = arith.addf %73, %74 : vector<16x128xf32>
      %76 = arith.mulf %28, %75 : vector<16x128xf32>
      %77 = arith.mulf %25, %71 : vector<16x128xf32>
      %78 = arith.addf %31, %77 : vector<16x128xf32>
      %79 = arith.mulf %26, %68 : vector<16x128xf32>
      %80 = arith.addf %78, %79 : vector<16x128xf32>
      %81 = arith.mulf %28, %80 : vector<16x128xf32>
      %c1_i32_40 = arith.constant 1 : i32
      %82 = tpu.dynamic_rotate %65 by %c1_i32_40 dim 0 : vector<16x128xf32>, i32 -> vector<16x128xf32>
      %83 = arith.mulf %82, %20 : vector<16x128xf32>
      %84 = arith.subf %65, %83 : vector<16x128xf32>
      %c1_i32_41 = arith.constant 1 : i32
      %85 = tpu.dynamic_rotate %54 by %c1_i32_41 dim 1 : vector<16x128xf32>, i32 -> vector<16x128xf32>
      %86 = arith.mulf %85, %12 : vector<16x128xf32>
      %87 = arith.subf %54, %86 : vector<16x128xf32>
      %88 = arith.addf %84, %87 : vector<16x128xf32>
      %89 = arith.mulf %27, %88 : vector<16x128xf32>
      %90 = arith.addf %33, %89 : vector<16x128xf32>
      %91 = arith.mulf %28, %90 : vector<16x128xf32>
      %c0_42 = arith.constant 0 : index
      %c0_43 = arith.constant 0 : index
      %92 = vector.load %arg14[%c0_42, %c0_43] : memref<16x128xf32, #tpu.memory_space<vmem>>, vector<16x128xf32>
      tpu.vector_store %arg14[%c0_42, %c0_43], %54 {strides = array<i32>} : memref<16x128xf32, #tpu.memory_space<vmem>>, vector<16x128xf32>,
      %c0_44 = arith.constant 0 : index
      %c0_45 = arith.constant 0 : index
      %93 = vector.load %arg15[%c0_44, %c0_45] : memref<16x128xf32, #tpu.memory_space<vmem>>, vector<16x128xf32>
      tpu.vector_store %arg15[%c0_44, %c0_45], %65 {strides = array<i32>} : memref<16x128xf32, #tpu.memory_space<vmem>>, vector<16x128xf32>,
      %c0_46 = arith.constant 0 : index
      %c0_47 = arith.constant 0 : index
      %94 = vector.load %arg16[%c0_46, %c0_47] : memref<16x128xf32, #tpu.memory_space<vmem>>, vector<16x128xf32>
      tpu.vector_store %arg16[%c0_46, %c0_47], %81 {strides = array<i32>} : memref<16x128xf32, #tpu.memory_space<vmem>>, vector<16x128xf32>,
      %c0_48 = arith.constant 0 : index
      %c0_49 = arith.constant 0 : index
      %95 = vector.load %arg17[%c0_48, %c0_49] : memref<16x128xf32, #tpu.memory_space<vmem>>, vector<16x128xf32>
      tpu.vector_store %arg17[%c0_48, %c0_49], %76 {strides = array<i32>} : memref<16x128xf32, #tpu.memory_space<vmem>>, vector<16x128xf32>,
      %c0_50 = arith.constant 0 : index
      %c0_51 = arith.constant 0 : index
      %96 = vector.load %arg18[%c0_50, %c0_51] : memref<16x128xf32, #tpu.memory_space<vmem>>, vector<16x128xf32>
      tpu.vector_store %arg18[%c0_50, %c0_51], %91 {strides = array<i32>} : memref<16x128xf32, #tpu.memory_space<vmem>>, vector<16x128xf32>,
      %c0_52 = arith.constant 0 : index
      %c0_53 = arith.constant 0 : index
      %c0_54 = arith.constant 0 : index
      %97 = vector.load %arg5[%c0_52, %c0_53, %c0_54] : memref<1x128x128xf32, #tpu.memory_space<vmem>>, vector<1x128x128xf32>
      %98 = vector.shape_cast %97 : vector<1x128x128xf32> to vector<128x128xf32>
      %c0_55 = arith.constant 0 : index
      %c0_56 = arith.constant 0 : index
      %c0_57 = arith.constant 0 : index
      %99 = vector.load %arg6[%c0_55, %c0_56, %c0_57] : memref<1x16x128xf32, #tpu.memory_space<vmem>>, vector<1x16x128xf32>
      %100 = vector.shape_cast %99 : vector<1x16x128xf32> to vector<16x128xf32>
      %cst_58 = arith.constant dense<0.000000e+00> : vector<16x128xf32>
      %101 = tpu.matmul %54, %98, %cst_58 {dimension_numbers = #tpu.dot_dimension_numbers<[1], [0], [0], [1], [0, 0, 1, 1], [], []>} : vector<16x128xf32>, vector<128x128xf32>, vector<16x128xf32> -> vector<16x128xf32>
      %cst_59 = arith.constant dense<0.000000e+00> : vector<16x128xf32>
      %102 = tpu.matmul %65, %98, %cst_59 {dimension_numbers = #tpu.dot_dimension_numbers<[1], [0], [0], [1], [0, 0, 1, 1], [], []>} : vector<16x128xf32>, vector<128x128xf32>, vector<16x128xf32> -> vector<16x128xf32>
      %103 = arith.mulf %101, %100 : vector<16x128xf32>
      %cst_60 = arith.constant dense<0.000000e+00> : vector<128xf32>
      %104 = vector.multi_reduction <add>, %103, %cst_60 [0] : vector<16x128xf32> to vector<128xf32>
      %105 = vector.shape_cast %104 : vector<128xf32> to vector<1x128xf32>
      %c0_61 = arith.constant 0 : index
      %106 = arith.index_cast %23 : i32 to index
      %c0_62 = arith.constant 0 : index
      %107 = vector.load %arg12[%c0_61, %106, %c0_62] : memref<1x32x128xf32, #tpu.memory_space<vmem>>, vector<1x1x128xf32>
      %108 = vector.shape_cast %107 : vector<1x1x128xf32> to vector<1x128xf32>
      %109 = vector.shape_cast %105 : vector<1x128xf32> to vector<1x1x128xf32>
      tpu.vector_store %arg12[%c0_61, %106, %c0_62], %109 {strides = array<i32>} : memref<1x32x128xf32, #tpu.memory_space<vmem>>, vector<1x1x128xf32>,
      %110 = arith.mulf %102, %100 : vector<16x128xf32>
      %cst_63 = arith.constant dense<0.000000e+00> : vector<128xf32>
      %111 = vector.multi_reduction <add>, %110, %cst_63 [0] : vector<16x128xf32> to vector<128xf32>
      %112 = vector.shape_cast %111 : vector<128xf32> to vector<1x128xf32>
      %c0_64 = arith.constant 0 : index
      %113 = arith.index_cast %23 : i32 to index
      %c0_65 = arith.constant 0 : index
      %114 = vector.load %arg13[%c0_64, %113, %c0_65] : memref<1x32x128xf32, #tpu.memory_space<vmem>>, vector<1x1x128xf32>
      %115 = vector.shape_cast %114 : vector<1x1x128xf32> to vector<1x128xf32>
      %116 = vector.shape_cast %112 : vector<1x128xf32> to vector<1x1x128xf32>
      tpu.vector_store %arg13[%c0_64, %113, %c0_65], %116 {strides = array<i32>} : memref<1x32x128xf32, #tpu.memory_space<vmem>>, vector<1x1x128xf32>,
    }
    %c32_i32_4 = arith.constant 32 : i32
    return
  }
  func.func @transform_0(%arg0: i32, %arg1: i32) -> (i32, i32, i32) {
    %c0_i32 = arith.constant 0 : i32
    %c0_i32_0 = arith.constant 0 : i32
    return %arg0, %arg1, %c0_i32 : i32, i32, i32
  }
  func.func @transform_1(%arg0: i32, %arg1: i32) -> (i32, i32, i32) {
    %c0_i32 = arith.constant 0 : i32
    %c0_i32_0 = arith.constant 0 : i32
    %c0_i32_1 = arith.constant 0 : i32
    return %arg0, %c0_i32, %c0_i32_0 : i32, i32, i32
  }
  func.func @transform_2(%arg0: i32, %arg1: i32) -> (i32, i32, i32) {
    %c0_i32 = arith.constant 0 : i32
    %c0_i32_0 = arith.constant 0 : i32
    %c0_i32_1 = arith.constant 0 : i32
    return %arg0, %c0_i32, %c0_i32_0 : i32, i32, i32
  }
  func.func @transform_3(%arg0: i32, %arg1: i32) -> (i32, i32, i32) {
    %c0_i32 = arith.constant 0 : i32
    %c0_i32_0 = arith.constant 0 : i32
    %c0_i32_1 = arith.constant 0 : i32
    return %arg0, %c0_i32, %c0_i32_0 : i32, i32, i32
  }
  func.func @transform_4(%arg0: i32, %arg1: i32) -> (i32, i32, i32) {
    %c0_i32 = arith.constant 0 : i32
    %c0_i32_0 = arith.constant 0 : i32
    %c0_i32_1 = arith.constant 0 : i32
    return %arg0, %c0_i32, %c0_i32_0 : i32, i32, i32
  }
  func.func @transform_5(%arg0: i32, %arg1: i32) -> (i32, i32) {
    %c0_i32 = arith.constant 0 : i32
    %c0_i32_0 = arith.constant 0 : i32
    %c0_i32_1 = arith.constant 0 : i32
    return %c0_i32, %c0_i32_0 : i32, i32
  }
  func.func @transform_6(%arg0: i32, %arg1: i32) -> (i32, i32) {
    %c0_i32 = arith.constant 0 : i32
    %c0_i32_0 = arith.constant 0 : i32
    %c0_i32_1 = arith.constant 0 : i32
    return %c0_i32, %c0_i32_0 : i32, i32
  }
  func.func @transform_7(%arg0: i32, %arg1: i32) -> (i32, i32) {
    %c0_i32 = arith.constant 0 : i32
    %c0_i32_0 = arith.constant 0 : i32
    %c0_i32_1 = arith.constant 0 : i32
    return %c0_i32, %c0_i32_0 : i32, i32
  }
  func.func @transform_8(%arg0: i32, %arg1: i32) -> (i32, i32) {
    %c0_i32 = arith.constant 0 : i32
    %c0_i32_0 = arith.constant 0 : i32
    %c0_i32_1 = arith.constant 0 : i32
    return %c0_i32, %c0_i32_0 : i32, i32
  }
  func.func @transform_9(%arg0: i32, %arg1: i32) -> (i32, i32) {
    %c0_i32 = arith.constant 0 : i32
    %c0_i32_0 = arith.constant 0 : i32
    %c0_i32_1 = arith.constant 0 : i32
    return %c0_i32, %c0_i32_0 : i32, i32
  }
  func.func @transform_10(%arg0: i32, %arg1: i32) -> (i32, i32, i32) {
    %c0_i32 = arith.constant 0 : i32
    %c0_i32_0 = arith.constant 0 : i32
    return %arg0, %arg1, %c0_i32 : i32, i32, i32
  }
  func.func @transform_11(%arg0: i32, %arg1: i32) -> (i32, i32, i32) {
    %c0_i32 = arith.constant 0 : i32
    %c0_i32_0 = arith.constant 0 : i32
    return %arg0, %arg1, %c0_i32 : i32, i32, i32
  }
}

</mosaic_0001>

<llo_original>
// kernel: physics_deepwave_forward.2
$region0: #{physics_deepwave_forward.2}
  #allocation0 [shape = 'u32[]', space=smem, size = 0x4, offset = 0x4, fixed_abs, tag = 'smem constant byte address 0x4 - core index']
  #allocation1 [shape = 'u32[144,128]{1,0:T(1,128)}', space=vmem, size = 0x12000, scoped, tag = 'internal scratch']
  %s0 = inlined_call_operand.vmem [shape: f32[16,128], index: 0, kind: input, shape index: {}]
  %s1 = inlined_call_operand.hbm [shape: f32[16,128], index: 1, kind: input, shape index: {}]
  %s2 = inlined_call_operand.hbm [shape: f32[16,128], index: 2, kind: input, shape index: {}]
  %s3 = inlined_call_operand.vmem [shape: f32[16,128], index: 3, kind: output, shape index: {0}]
  %s4 = inlined_call_operand.vmem [shape: f32[16,128], index: 4, kind: output, shape index: {1}]
  %s5 = inlined_call_operand.vmem [shape: f32[16,128], index: 5, kind: output, shape index: {2}]
  %s6 = inlined_call_operand.vmem [shape: f32[16,128], index: 6, kind: output, shape index: {3}]
  %s7 = inlined_call_operand.vmem [shape: f32[16,128], index: 7, kind: output, shape index: {4}]
  %8 = xla_tuple %s3, %s4, %s5, %s6, %s7
  %s9 = sld [smem:[#allocation0]]
  $region62: #{physics_deepwave_forward.2} parent=0
    _
  %s11 = ssub.s32 1, %s9
  %s12 = scalar_select 0, %s11, %s9
  $region1: #{physics_deepwave_forward.2} parent=0
    #allocation2 [shape = 'u8[8192]{0}', space=vmem, size = 0x2000, scoped, tag = 'input window, operand 1, single buffered']
    #allocation3 [shape = 's32[1]{0}', space=sflag, size = 0x4, scoped, tag = 'scoped memory for physics_deepwave_forward.2']
    #allocation4 [shape = 'u8[8192]{0}', space=vmem, size = 0x2000, scoped, tag = 'input window, operand 2, single buffered']
    #allocation5 [shape = 's32[1]{0}', space=sflag, size = 0x4, scoped, tag = 'scoped memory for physics_deepwave_forward.2']
    %13 = vsyncpa [#allocation3], 0
    %14 = vsyncpa [#allocation5], 0
    // Predicated region
    $region2: #{physics_deepwave_forward.2} parent=1 // pred_check
      _
    $region3: #{physics_deepwave_forward.2} parent=1 // pred_check_branch
      %16 = sbr.rel (0) target = $region5
    $region4: #{physics_deepwave_forward.2} parent=1 // pred_region
      _
    $region5: #{physics_deepwave_forward.2} parent=1 // pred_fallthru
      _
    // Predicated region
    $region6: #{physics_deepwave_forward.2} parent=1 // pred_check
      _
    $region7: #{physics_deepwave_forward.2} parent=1 // pred_check_branch
      %18 = sbr.rel (0) target = $region9
    $region8: #{physics_deepwave_forward.2} parent=1 // pred_region
      %s20 = ssub.s32 256, 256
      %21 = vsyncadd [#allocation3], %s20
      %s22 = sshll.u32 [#allocation2], 4
      %s23 = int_to_ptr.vmem [resolvable:$true] %s22
      %28 = dma.hbm_to_vmem [thread:$0]  %s1, 256, %s23, [#allocation3], 128, 128, 8
    $region9: #{physics_deepwave_forward.2} parent=1 // pred_fallthru
      _
    // Predicated region
    $region10: #{physics_deepwave_forward.2} parent=1 // pred_check
      _
    $region11: #{physics_deepwave_forward.2} parent=1 // pred_check_branch
      %30 = sbr.rel (0) target = $region13
    $region12: #{physics_deepwave_forward.2} parent=1 // pred_region
      %s32 = ssub.s32 256, 256
      %33 = vsyncadd [#allocation5], %s32
      %s34 = sshll.u32 [#allocation4], 4
      %s35 = int_to_ptr.vmem [resolvable:$true] %s34
      %40 = dma.hbm_to_vmem [thread:$0]  %s2, 256, %s35, [#allocation5], 128, 128, 8
    $region13: #{physics_deepwave_forward.2} parent=1 // pred_fallthru
      _
    // Predicated region
    $region14: #{physics_deepwave_forward.2} parent=1 // pred_check
      _
    $region15: #{physics_deepwave_forward.2} parent=1 // pred_check_branch
      %42 = sbr.rel (0) target = $region17
    $region16: #{physics_deepwave_forward.2} parent=1 // pred_region
      %43 = dma.done [#allocation3], 256
    $region17: #{physics_deepwave_forward.2} parent=1 // pred_fallthru
      _
    // Predicated region
    $region18: #{physics_deepwave_forward.2} parent=1 // pred_check
      _
    $region19: #{physics_deepwave_forward.2} parent=1 // pred_check_branch
      %45 = sbr.rel (0) target = $region21
    $region20: #{physics_deepwave_forward.2} parent=1 // pred_region
      %46 = dma.done [#allocation5], 256
    $region21: #{physics_deepwave_forward.2} parent=1 // pred_fallthru
      _
    %v47 = vld [vmem:[%s0] sm:$0xff]
    %v48 = vld [vmem:[%s0 + $0x8] sm:$0xff]
    %v49 = vld [vmem:[#allocation2] sm:$0xff]
    %v50 = vld [vmem:[#allocation2 + $0x8] sm:$0xff]
    %v51 = vld [vmem:[#allocation4] sm:$0xff]
    %v52 = vld [vmem:[#allocation4 + $0x8] sm:$0xff]
    %v53 = vmul.f32 %v51, %v49
    %v54 = vmul.f32 %v52, %v50
    %v55 = vmul.f32 %v53, %v49
    %v56 = vmul.f32 %v54, %v50
    %v57 = vmul.f32 %v47, %v47
    %v58 = vmul.f32 %v48, %v48
    %v59 = vmul.f32 %v49, 2.0
    %v60 = vmul.f32 %v50, 2.0
    %v61 = vmul.f32 %v59, %v49
    %v62 = vmul.f32 %v60, %v50
    %v63 = vsub.f32 %v57, %v61
    %v64 = vsub.f32 %v58, %v62
    %v65 = vmul.f32 %v51, %v63
    %v66 = vmul.f32 %v52, %v64
    %v67 = vrcp.pop %v51
    %v68 = vmul.f32 1.0, %v67
    %v69 = vrcp.pop %v52
    %v70 = vmul.f32 1.0, %v69
    %v71 = vmul.f32 %v68, 0.0002
    %v72 = vmul.f32 %v70, 0.0002
    %73 = vst [vmem:[%s3] sm:$0xff] %v71
    %74 = vst [vmem:[%s3 + $0x8] sm:$0xff] %v72
    %v75 = vmul.f32 %v55, 2.0
    %v76 = vmul.f32 %v56, 2.0
    %v77 = vadd.f32 %v65, %v75
    %v78 = vadd.f32 %v66, %v76
    %v79 = vmul.f32 %v77, 0.0002
    %v80 = vmul.f32 %v78, 0.0002
    %81 = vst [vmem:[%s4] sm:$0xff] %v79
    %82 = vst [vmem:[%s4 + $0x8] sm:$0xff] %v80
    %v83 = vmul.f32 %v65, 0.0002
    %v84 = vmul.f32 %v66, 0.0002
    %85 = vst [vmem:[%s5] sm:$0xff] %v83
    %86 = vst [vmem:[%s5 + $0x8] sm:$0xff] %v84
    %v87 = vmul.f32 %v55, 0.0002
    %v88 = vmul.f32 %v56, 0.0002
    %89 = vst [vmem:[%s6] sm:$0xff] %v87
    %90 = vst [vmem:[%s6 + $0x8] sm:$0xff] %v88
    %91 = vst [vmem:[%s7] sm:$0xff] %v68
    %92 = vst [vmem:[%s7 + $0x8] sm:$0xff] %v70
    // Predicated region
    $region22: #{physics_deepwave_forward.2} parent=1 // pred_check
      _
    $region23: #{physics_deepwave_forward.2} parent=1 // pred_check_branch
      %94 = sbr.rel (0) target = $region25
    $region24: #{physics_deepwave_forward.2} parent=1 // pred_region
      _
    $region25: #{physics_deepwave_forward.2} parent=1 // pred_fallthru
      _
    // Predicated region
    $region26: #{physics_deepwave_forward.2} parent=1 // pred_check
      _
    $region27: #{physics_deepwave_forward.2} parent=1 // pred_check_branch
      %96 = sbr.rel (0) target = $region29
    $region28: #{physics_deepwave_forward.2} parent=1 // pred_region
      _
    $region29: #{physics_deepwave_forward.2} parent=1 // pred_fallthru
      _
    // Predicated region
    $region30: #{physics_deepwave_forward.2} parent=1 // pred_check
      _
    $region31: #{physics_deepwave_forward.2} parent=1 // pred_check_branch
      %98 = sbr.rel (0) target = $region33
    $region32: #{physics_deepwave_forward.2} parent=1 // pred_region
      _
    $region33: #{physics_deepwave_forward.2} parent=1 // pred_fallthru
      _
    // Predicated region
    $region34: #{physics_deepwave_forward.2} parent=1 // pred_check
      _
    $region35: #{physics_deepwave_forward.2} parent=1 // pred_check_branch
      %100 = sbr.rel (0) target = $region37
    $region36: #{physics_deepwave_forward.2} parent=1 // pred_region
      _
    $region37: #{physics_deepwave_forward.2} parent=1 // pred_fallthru
      _
    // Predicated region
    $region38: #{physics_deepwave_forward.2} parent=1 // pred_check
      _
    $region39: #{physics_deepwave_forward.2} parent=1 // pred_check_branch
      %102 = sbr.rel (0) target = $region41
    $region40: #{physics_deepwave_forward.2} parent=1 // pred_region
      _
    $region41: #{physics_deepwave_forward.2} parent=1 // pred_fallthru
      _
    // Predicated region
    $region42: #{physics_deepwave_forward.2} parent=1 // pred_check
      _
    $region43: #{physics_deepwave_forward.2} parent=1 // pred_check_branch
      %104 = sbr.rel (0) target = $region45
    $region44: #{physics_deepwave_forward.2} parent=1 // pred_region
      _
    $region45: #{physics_deepwave_forward.2} parent=1 // pred_fallthru
      _
    // Predicated region
    $region46: #{physics_deepwave_forward.2} parent=1 // pred_check
      _
    $region47: #{physics_deepwave_forward.2} parent=1 // pred_check_branch
      %106 = sbr.rel (0) target = $region49
    $region48: #{physics_deepwave_forward.2} parent=1 // pred_region
      _
    $region49: #{physics_deepwave_forward.2} parent=1 // pred_fallthru
      _
    // Predicated region
    $region50: #{physics_deepwave_forward.2} parent=1 // pred_check
      _
    $region51: #{physics_deepwave_forward.2} parent=1 // pred_check_branch
      %108 = sbr.rel (0) target = $region53
    $region52: #{physics_deepwave_forward.2} parent=1 // pred_region
      _
    $region53: #{physics_deepwave_forward.2} parent=1 // pred_fallthru
      _
    // Predicated region
    $region54: #{physics_deepwave_forward.2} parent=1 // pred_check
      _
    $region55: #{physics_deepwave_forward.2} parent=1 // pred_check_branch
      %110 = sbr.rel (0) target = $region57
    $region56: #{physics_deepwave_forward.2} parent=1 // pred_region
      _
    $region57: #{physics_deepwave_forward.2} parent=1 // pred_fallthru
      _
    // Predicated region
    $region58: #{physics_deepwave_forward.2} parent=1 // pred_check
      _
    $region59: #{physics_deepwave_forward.2} parent=1 // pred_check_branch
      %112 = sbr.rel (0) target = $region61
    $region60: #{physics_deepwave_forward.2} parent=1 // pred_region
      _
    $region61: #{physics_deepwave_forward.2} parent=1 // pred_fallthru
      _
    %113 = vsyncpa [#allocation3], 1
    %114 = vsyncpa [#allocation5], 1

// kernel: physics_deepwave_forward.3
$region0: #{physics_deepwave_forward.3}
  #allocation0 [shape = 'u32[]', space=smem, size = 0x4, offset = 0x4, fixed_abs, tag = 'smem constant byte address 0x4 - core index']
  #allocation1 [shape = 'u32[144,128]{1,0:T(1,128)}', space=vmem, size = 0x12000, scoped, tag = 'internal scratch']
  #allocation2 [shape = 'f32[16,128]{1,0:T(8,128)}', space=vmem, size = 0x2000, scoped, tag = 'scratch operand']
  #allocation3 [shape = 'f32[16,128]{1,0:T(8,128)}', space=vmem, size = 0x2000, scoped, tag = 'scratch operand']
  #allocation4 [shape = 'f32[16,128]{1,0:T(8,128)}', space=vmem, size = 0x2000, scoped, tag = 'scratch operand']
  #allocation5 [shape = 'f32[16,128]{1,0:T(8,128)}', space=vmem, size = 0x2000, scoped, tag = 'scratch operand']
  #allocation6 [shape = 'f32[16,128]{1,0:T(8,128)}', space=vmem, size = 0x2000, scoped, tag = 'scratch operand']
  %s0 = inlined_call_operand.vmem [shape: f32[2,32,128], index: 0, kind: input, shape index: {}]
  %s1 = inlined_call_operand.vmem [shape: f32[2,16,128], index: 1, kind: input, shape index: {}]
  %s2 = inlined_call_operand.vmem [shape: f32[2,128,128], index: 2, kind: input, shape index: {}]
  %s3 = inlined_call_operand.vmem [shape: f32[2,128,128], index: 3, kind: input, shape index: {}]
  %s4 = inlined_call_operand.vmem [shape: f32[2,16,128], index: 4, kind: input, shape index: {}]
  %s5 = inlined_call_operand.vmem [shape: f32[16,128], index: 5, kind: input, shape index: {}]
  %s6 = inlined_call_operand.vmem [shape: f32[16,128], index: 6, kind: input, shape index: {}]
  %s7 = inlined_call_operand.vmem [shape: f32[16,128], index: 7, kind: input, shape index: {}]
  %s8 = inlined_call_operand.vmem [shape: f32[16,128], index: 8, kind: input, shape index: {}]
  %s9 = inlined_call_operand.vmem [shape: f32[16,128], index: 9, kind: input, shape index: {}]
  %s10 = inlined_call_operand.vmem [shape: f32[2,32,128], index: 10, kind: output, shape index: {0}]
  %s11 = inlined_call_operand.vmem [shape: f32[2,32,128], index: 11, kind: output, shape index: {1}]
  %12 = xla_tuple %s10, %s11
  %s13 = sld [smem:[#allocation0]]
  $region92: #{physics_deepwave_forward.3} parent=0
    _
  %s15 = ssub.s32 1, %s13
  %s16 = scalar_select 0, %s15, %s13
  loop: start=0, step=1, limit=4
  $region2: #{physics_deepwave_forward.3} parent=0 // loop_pre_header
    _
  $region3: #{physics_deepwave_forward.3} parent=0 // loop_header
    %s18 = sphi 0, %s22
    %p19 = scmp.ge.s32.totalorder %s18, 4
    %s25 = sphi 0, %s37
    %s26 = sphi 0, %s33
    %s27 = sphi 0, %s25
    %s28 = sphi 0, %s26
    %s29 = sphi 0, %s27
    %s30 = sphi 0, %s28
    %s42 = sphi 0, %s44
    %s45 = sphi 0, %s42
    %s46 = sphi 0, %s45
    %s62 = sphi 0, %s46
    %s68 = sphi 0, %s70
    %s71 = sphi 0, %s68
    %s72 = sphi 0, %s71
    %s88 = sphi 0, %s72
    %s94 = sphi 0, %s96
    %s97 = sphi 0, %s94
    %s98 = sphi 0, %s97
    %s114 = sphi 0, %s98
    %s120 = sphi 0, %s122
    %s123 = sphi 0, %s120
    %s124 = sphi 0, %s123
    %s140 = sphi 0, %s124
    %s146 = sphi 0, %s148
    %s149 = sphi 0, %s146
    %s150 = sphi 0, %s149
    %s166 = sphi 0, %s150
    %s170 = sphi 0, %s170
    %s172 = sphi 0, %s170
    %s173 = sphi 0, %s172
    %s187 = sphi 0, %s173
    %s191 = sphi 0, %s191
    %s193 = sphi 0, %s191
    %s194 = sphi 0, %s193
    %s208 = sphi 0, %s194
    %s212 = sphi 0, %s212
    %s214 = sphi 0, %s212
    %s215 = sphi 0, %s214
    %s229 = sphi 0, %s215
    %s233 = sphi 0, %s233
    %s235 = sphi 0, %s233
    %s236 = sphi 0, %s235
    %s250 = sphi 0, %s236
    %s254 = sphi 0, %s254
    %s256 = sphi 0, %s254
    %s257 = sphi 0, %s256
    %s271 = sphi 0, %s257
    %s279 = sphi 0, %s281
    %s282 = sphi 0, %s279
    %s283 = sphi 0, %s282
    %s299 = sphi 0, %s283
    %s307 = sphi 0, %s309
    %s310 = sphi 0, %s307
    %s311 = sphi 0, %s310
    %s327 = sphi 0, %s311
  $region4: #{physics_deepwave_forward.3} parent=0 // loop_header_branch
    %21 = sbr.rel (%p19) target = $region8
  $region5: #{physics_deepwave_forward.3} parent=0 // loop_body
    %s23 = ssub.s32 %s18, 1
    %s24 = ssub.s32 %s18, 2
    %s31 = sadd.s32 1, %s26
    %p32 = scmp.ge.s32.totalorder %s31, 1
    %s33 = scalar_select %p32, 0, %s31
    %s34 = sadd.s32 1, %s25
    %s35 = scalar_select %p32, %s34, %s25
    %p36 = scmp.ge.s32.totalorder %s35, 2
    %s37 = scalar_select %p36, 0, %s35
    %s38 = ssub.s32 %s25, %s37
    %s39 = ssub.s32 %s26, %s33
    %s40 = sor.u32 %s38, %s39
    %p41 = scmp.eq.s32.totalorder %s40, 0
    %s43 = sadd.s32 %s42, 1
    %s44 = scalar_select %p41, %s42, %s43
    %p47 = pneg %p41
    %p48 = scmp.eq.s32.totalorder %s18, 1
    %p49 = por %p47, %p48
    %p50 = scmp.ne.s32.totalorder %s42, %s45
    %p51 = scmp.eq.s32.totalorder %s18, 0
    %p52 = por %p50, %p51
    %p53 = scmp.ne.s32.totalorder %s42, %s45
    %p54 = scmp.eq.s32.totalorder %s23, 1
    %p55 = por %p53, %p54
    %p56 = scmp.ne.s32.totalorder %s45, %s46
    %p57 = scmp.eq.s32.totalorder %s23, 0
    %p58 = por %p56, %p57
    %p59 = scmp.ne.s32.totalorder %s45, %s46
    %p60 = scmp.eq.s32.totalorder %s24, 1
    %p61 = por %p59, %p60
    %p63 = scmp.ne.s32.totalorder %s46, %s62
    %p64 = scmp.eq.s32.totalorder %s24, 0
    %p65 = por %p63, %p64
    %s66 = ssub.s32 %s25, %s37
    %p67 = scmp.eq.s32.totalorder %s66, 0
    %s69 = sadd.s32 %s68, 1
    %s70 = scalar_select %p67, %s68, %s69
    %p73 = pneg %p67
    %p74 = scmp.eq.s32.totalorder %s18, 1
    %p75 = por %p73, %p74
    %p76 = scmp.ne.s32.totalorder %s68, %s71
    %p77 = scmp.eq.s32.totalorder %s18, 0
    %p78 = por %p76, %p77
    %p79 = scmp.ne.s32.totalorder %s68, %s71
    %p80 = scmp.eq.s32.totalorder %s23, 1
    %p81 = por %p79, %p80
    %p82 = scmp.ne.s32.totalorder %s71, %s72
    %p83 = scmp.eq.s32.totalorder %s23, 0
    %p84 = por %p82, %p83
    %p85 = scmp.ne.s32.totalorder %s71, %s72
    %p86 = scmp.eq.s32.totalorder %s24, 1
    %p87 = por %p85, %p86
    %p89 = scmp.ne.s32.totalorder %s72, %s88
    %p90 = scmp.eq.s32.totalorder %s24, 0
    %p91 = por %p89, %p90
    %s92 = ssub.s32 %s25, %s37
    %p93 = scmp.eq.s32.totalorder %s92, 0
    %s95 = sadd.s32 %s94, 1
    %s96 = scalar_select %p93, %s94, %s95
    %p99 = pneg %p93
    %p100 = scmp.eq.s32.totalorder %s18, 1
    %p101 = por %p99, %p100
    %p102 = scmp.ne.s32.totalorder %s94, %s97
    %p103 = scmp.eq.s32.totalorder %s18, 0
    %p104 = por %p102, %p103
    %p105 = scmp.ne.s32.totalorder %s94, %s97
    %p106 = scmp.eq.s32.totalorder %s23, 1
    %p107 = por %p105, %p106
    %p108 = scmp.ne.s32.totalorder %s97, %s98
    %p109 = scmp.eq.s32.totalorder %s23, 0
    %p110 = por %p108, %p109
    %p111 = scmp.ne.s32.totalorder %s97, %s98
    %p112 = scmp.eq.s32.totalorder %s24, 1
    %p113 = por %p111, %p112
    %p115 = scmp.ne.s32.totalorder %s98, %s114
    %p116 = scmp.eq.s32.totalorder %s24, 0
    %p117 = por %p115, %p116
    %s118 = ssub.s32 %s25, %s37
    %p119 = scmp.eq.s32.totalorder %s118, 0
    %s121 = sadd.s32 %s120, 1
    %s122 = scalar_select %p119, %s120, %s121
    %p125 = pneg %p119
    %p126 = scmp.eq.s32.totalorder %s18, 1
    %p127 = por %p125, %p126
    %p128 = scmp.ne.s32.totalorder %s120, %s123
    %p129 = scmp.eq.s32.totalorder %s18, 0
    %p130 = por %p128, %p129
    %p131 = scmp.ne.s32.totalorder %s120, %s123
    %p132 = scmp.eq.s32.totalorder %s23, 1
    %p133 = por %p131, %p132
    %p134 = scmp.ne.s32.totalorder %s123, %s124
    %p135 = scmp.eq.s32.totalorder %s23, 0
    %p136 = por %p134, %p135
    %p137 = scmp.ne.s32.totalorder %s123, %s124
    %p138 = scmp.eq.s32.totalorder %s24, 1
    %p139 = por %p137, %p138
    %p141 = scmp.ne.s32.totalorder %s124, %s140
    %p142 = scmp.eq.s32.totalorder %s24, 0
    %p143 = por %p141, %p142
    %s144 = ssub.s32 %s25, %s37
    %p145 = scmp.eq.s32.totalorder %s144, 0
    %s147 = sadd.s32 %s146, 1
    %s148 = scalar_select %p145, %s146, %s147
    %p151 = pneg %p145
    %p152 = scmp.eq.s32.totalorder %s18, 1
    %p153 = por %p151, %p152
    %p154 = scmp.ne.s32.totalorder %s146, %s149
    %p155 = scmp.eq.s32.totalorder %s18, 0
    %p156 = por %p154, %p155
    %p157 = scmp.ne.s32.totalorder %s146, %s149
    %p158 = scmp.eq.s32.totalorder %s23, 1
    %p159 = por %p157, %p158
    %p160 = scmp.ne.s32.totalorder %s149, %s150
    %p161 = scmp.eq.s32.totalorder %s23, 0
    %p162 = por %p160, %p161
    %p163 = scmp.ne.s32.totalorder %s149, %s150
    %p164 = scmp.eq.s32.totalorder %s24, 1
    %p165 = por %p163, %p164
    %p167 = scmp.ne.s32.totalorder %s150, %s166
    %p168 = scmp.eq.s32.totalorder %s24, 0
    %p169 = por %p167, %p168
    %s171 = sadd.s32 %s170, 1
    %p174 = scmp.eq.s32.totalorder %s18, 1
    %p175 = scmp.ne.s32.totalorder %s170, %s172
    %p176 = scmp.eq.s32.totalorder %s18, 0
    %p177 = por %p175, %p176
    %p178 = scmp.ne.s32.totalorder %s170, %s172
    %p179 = scmp.eq.s32.totalorder %s23, 1
    %p180 = por %p178, %p179
    %p181 = scmp.ne.s32.totalorder %s172, %s173
    %p182 = scmp.eq.s32.totalorder %s23, 0
    %p183 = por %p181, %p182
    %p184 = scmp.ne.s32.totalorder %s172, %s173
    %p185 = scmp.eq.s32.totalorder %s24, 1
    %p186 = por %p184, %p185
    %p188 = scmp.ne.s32.totalorder %s173, %s187
    %p189 = scmp.eq.s32.totalorder %s24, 0
    %p190 = por %p188, %p189
    %s192 = sadd.s32 %s191, 1
    %p195 = scmp.eq.s32.totalorder %s18, 1
    %p196 = scmp.ne.s32.totalorder %s191, %s193
    %p197 = scmp.eq.s32.totalorder %s18, 0
    %p198 = por %p196, %p197
    %p199 = scmp.ne.s32.totalorder %s191, %s193
    %p200 = scmp.eq.s32.totalorder %s23, 1
    %p201 = por %p199, %p200
    %p202 = scmp.ne.s32.totalorder %s193, %s194
    %p203 = scmp.eq.s32.totalorder %s23, 0
    %p204 = por %p202, %p203
    %p205 = scmp.ne.s32.totalorder %s193, %s194
    %p206 = scmp.eq.s32.totalorder %s24, 1
    %p207 = por %p205, %p206
    %p209 = scmp.ne.s32.totalorder %s194, %s208
    %p210 = scmp.eq.s32.totalorder %s24, 0
    %p211 = por %p209, %p210
    %s213 = sadd.s32 %s212, 1
    %p216 = scmp.eq.s32.totalorder %s18, 1
    %p217 = scmp.ne.s32.totalorder %s212, %s214
    %p218 = scmp.eq.s32.totalorder %s18, 0
    %p219 = por %p217, %p218
    %p220 = scmp.ne.s32.totalorder %s212, %s214
    %p221 = scmp.eq.s32.totalorder %s23, 1
    %p222 = por %p220, %p221
    %p223 = scmp.ne.s32.totalorder %s214, %s215
    %p224 = scmp.eq.s32.totalorder %s23, 0
    %p225 = por %p223, %p224
    %p226 = scmp.ne.s32.totalorder %s214, %s215
    %p227 = scmp.eq.s32.totalorder %s24, 1
    %p228 = por %p226, %p227
    %p230 = scmp.ne.s32.totalorder %s215, %s229
    %p231 = scmp.eq.s32.totalorder %s24, 0
    %p232 = por %p230, %p231
    %s234 = sadd.s32 %s233, 1
    %p237 = scmp.eq.s32.totalorder %s18, 1
    %p238 = scmp.ne.s32.totalorder %s233, %s235
    %p239 = scmp.eq.s32.totalorder %s18, 0
    %p240 = por %p238, %p239
    %p241 = scmp.ne.s32.totalorder %s233, %s235
    %p242 = scmp.eq.s32.totalorder %s23, 1
    %p243 = por %p241, %p242
    %p244 = scmp.ne.s32.totalorder %s235, %s236
    %p245 = scmp.eq.s32.totalorder %s23, 0
    %p246 = por %p244, %p245
    %p247 = scmp.ne.s32.totalorder %s235, %s236
    %p248 = scmp.eq.s32.totalorder %s24, 1
    %p249 = por %p247, %p248
    %p251 = scmp.ne.s32.totalorder %s236, %s250
    %p252 = scmp.eq.s32.totalorder %s24, 0
    %p253 = por %p251, %p252
    %s255 = sadd.s32 %s254, 1
    %p258 = scmp.eq.s32.totalorder %s18, 1
    %p259 = scmp.ne.s32.totalorder %s254, %s256
    %p260 = scmp.eq.s32.totalorder %s18, 0
    %p261 = por %p259, %p260
    %p262 = scmp.ne.s32.totalorder %s254, %s256
    %p263 = scmp.eq.s32.totalorder %s23, 1
    %p264 = por %p262, %p263
    %p265 = scmp.ne.s32.totalorder %s256, %s257
    %p266 = scmp.eq.s32.totalorder %s23, 0
    %p267 = por %p265, %p266
    %p268 = scmp.ne.s32.totalorder %s256, %s257
    %p269 = scmp.eq.s32.totalorder %s24, 1
    %p270 = por %p268, %p269
    %p272 = scmp.ne.s32.totalorder %s257, %s271
    %p273 = scmp.eq.s32.totalorder %s24, 0
    %p274 = por %p272, %p273
    %s275 = ssub.s32 %s25, %s37
    %s276 = ssub.s32 %s26, %s33
    %s277 = sor.u32 %s275, %s276
    %p278 = scmp.eq.s32.totalorder %s277, 0
    %s280 = sadd.s32 %s279, 1
    %s281 = scalar_select %p278, %s279, %s280
    %p284 = pneg %p278
    %p285 = scmp.eq.s32.totalorder %s18, 1
    %p286 = por %p284, %p285
    %p287 = scmp.ne.s32.totalorder %s279, %s282
    %p288 = scmp.eq.s32.totalorder %s18, 0
    %p289 = por %p287, %p288
    %p290 = scmp.ne.s32.totalorder %s279, %s282
    %p291 = scmp.eq.s32.totalorder %s23, 1
    %p292 = por %p290, %p291
    %p293 = scmp.ne.s32.totalorder %s282, %s283
    %p294 = scmp.eq.s32.totalorder %s23, 0
    %p295 = por %p293, %p294
    %p296 = scmp.ne.s32.totalorder %s282, %s283
    %p297 = scmp.eq.s32.totalorder %s24, 1
    %p298 = por %p296, %p297
    %p300 = scmp.ne.s32.totalorder %s283, %s299
    %p301 = scmp.eq.s32.totalorder %s24, 0
    %p302 = por %p300, %p301
    %s303 = ssub.s32 %s25, %s37
    %s304 = ssub.s32 %s26, %s33
    %s305 = sor.u32 %s303, %s304
    %p306 = scmp.eq.s32.totalorder %s305, 0
    %s308 = sadd.s32 %s307, 1
    %s309 = scalar_select %p306, %s307, %s308
    %p312 = pneg %p306
    %p313 = scmp.eq.s32.totalorder %s18, 1
    %p314 = por %p312, %p313
    %p315 = scmp.ne.s32.totalorder %s307, %s310
    %p316 = scmp.eq.s32.totalorder %s18, 0
    %p317 = por %p315, %p316
    %p318 = scmp.ne.s32.totalorder %s307, %s310
    %p319 = scmp.eq.s32.totalorder %s23, 1
    %p320 = por %p318, %p319
    %p321 = scmp.ne.s32.totalorder %s310, %s311
    %p322 = scmp.eq.s32.totalorder %s23, 0
    %p323 = por %p321, %p322
    %p324 = scmp.ne.s32.totalorder %s310, %s311
    %p325 = scmp.eq.s32.totalorder %s24, 1
    %p326 = por %p324, %p325
    %p328 = scmp.ne.s32.totalorder %s311, %s327
    %p329 = scmp.eq.s32.totalorder %s24, 0
    %p330 = por %p328, %p329
    %p331 = scmp.le.s32.totalorder 1, %s18
    %p332 = scmp.lt.s32.totalorder %s18, 3
    %p333 = pnand %p331, %p332
    %p334 = pneg %p333
    // Predicated region
    $region9: #{physics_deepwave_forward.3} parent=5 // pred_check
      _
    $region10: #{physics_deepwave_forward.3} parent=5 // pred_check_branch
      %336 = sbr.rel (%p333) target = $region12
    $region11: #{physics_deepwave_forward.3} parent=5 // pred_region
      %s337 = ssub.s32 %s18, 1
      // Predicated region
      $region13: #{physics_deepwave_forward.3} parent=11 // pred_check
        %p338 = pneg %p183
      $region14: #{physics_deepwave_forward.3} parent=11 // pred_check_branch
        %340 = sbr.rel (%p338) target = $region16
      $region15: #{physics_deepwave_forward.3} parent=11 // pred_region
        _
      $region16: #{physics_deepwave_forward.3} parent=11 // pred_fallthru
        _
      // Predicated region
      $region17: #{physics_deepwave_forward.3} parent=11 // pred_check
        %p341 = pneg %p204
      $region18: #{physics_deepwave_forward.3} parent=11 // pred_check_branch
        %343 = sbr.rel (%p341) target = $region20
      $region19: #{physics_deepwave_forward.3} parent=11 // pred_region
        _
      $region20: #{physics_deepwave_forward.3} parent=11 // pred_fallthru
        _
      // Predicated region
      $region21: #{physics_deepwave_forward.3} parent=11 // pred_check
        %p344 = pneg %p225
      $region22: #{physics_deepwave_forward.3} parent=11 // pred_check_branch
        %346 = sbr.rel (%p344) target = $region24
      $region23: #{physics_deepwave_forward.3} parent=11 // pred_region
        _
      $region24: #{physics_deepwave_forward.3} parent=11 // pred_fallthru
        _
      // Predicated region
      $region25: #{physics_deepwave_forward.3} parent=11 // pred_check
        %p347 = pneg %p246
      $region26: #{physics_deepwave_forward.3} parent=11 // pred_check_branch
        %349 = sbr.rel (%p347) target = $region28
      $region27: #{physics_deepwave_forward.3} parent=11 // pred_region
        _
      $region28: #{physics_deepwave_forward.3} parent=11 // pred_fallthru
        _
      // Predicated region
      $region29: #{physics_deepwave_forward.3} parent=11 // pred_check
        %p350 = pneg %p267
      $region30: #{physics_deepwave_forward.3} parent=11 // pred_check_branch
        %352 = sbr.rel (%p350) target = $region32
      $region31: #{physics_deepwave_forward.3} parent=11 // pred_region
        _
      $region32: #{physics_deepwave_forward.3} parent=11 // pred_fallthru
        _
    $region12: #{physics_deepwave_forward.3} parent=5 // pred_fallthru
      _
    %p353 = scmp.lt.s32.totalorder %s18, 2
    // Predicated region
    $region33: #{physics_deepwave_forward.3} parent=5 // pred_check
      %p354 = pneg %p353
    $region34: #{physics_deepwave_forward.3} parent=5 // pred_check_branch
      %356 = sbr.rel (%p354) target = $region36
    $region35: #{physics_deepwave_forward.3} parent=5 // pred_region
      // Predicated region
      $region37: #{physics_deepwave_forward.3} parent=35 // pred_check
        %p357 = pneg %p52
      $region38: #{physics_deepwave_forward.3} parent=35 // pred_check_branch
        %359 = sbr.rel (%p357) target = $region40
      $region39: #{physics_deepwave_forward.3} parent=35 // pred_region
        %s360 = smul.u32 4, %s26
        %p361 = scmp.lt.s32.totalorder %s25, 1
        %s362 = scalar_select %p361, %s25, 1
        %p363 = scmp.lt.s32.totalorder %s360, 3
        %s364 = scalar_select %p363, %s360, 3
        %s365 = smul.addr %s362, 4
        %s366 = sadd.s32 %s364, %s365
        %s367 = smul.addr %s366, 8
        %s368 = scalar_lea.vmem %s0, %s367
        %s369 = smul.u32 4, %s26
      $region40: #{physics_deepwave_forward.3} parent=35 // pred_fallthru
        _
      // Predicated region
      $region41: #{physics_deepwave_forward.3} parent=35 // pred_check
        %p370 = pneg %p78
      $region42: #{physics_deepwave_forward.3} parent=35 // pred_check_branch
        %372 = sbr.rel (%p370) target = $region44
      $region43: #{physics_deepwave_forward.3} parent=35 // pred_region
        %p373 = scmp.lt.s32.totalorder %s25, 1
        %s374 = scalar_select %p373, %s25, 1
        %s375 = smul.addr %s374, 2
        %s376 = smul.addr %s375, 8
        %s377 = scalar_lea.vmem %s1, %s376
      $region44: #{physics_deepwave_forward.3} parent=35 // pred_fallthru
        _
      // Predicated region
      $region45: #{physics_deepwave_forward.3} parent=35 // pred_check
        %p378 = pneg %p104
      $region46: #{physics_deepwave_forward.3} parent=35 // pred_check_branch
        %380 = sbr.rel (%p378) target = $region48
      $region47: #{physics_deepwave_forward.3} parent=35 // pred_region
        %p381 = scmp.lt.s32.totalorder %s25, 1
        %s382 = scalar_select %p381, %s25, 1
        %s383 = smul.addr %s382, 16
        %s384 = smul.addr %s383, 8
        %s385 = scalar_lea.vmem %s2, %s384
      $region48: #{physics_deepwave_forward.3} parent=35 // pred_fallthru
        _
      // Predicated region
      $region49: #{physics_deepwave_forward.3} parent=35 // pred_check
        %p386 = pneg %p130
      $region50: #{physics_deepwave_forward.3} parent=35 // pred_check_branch
        %388 = sbr.rel (%p386) target = $region52
      $region51: #{physics_deepwave_forward.3} parent=35 // pred_region
        %p389 = scmp.lt.s32.totalorder %s25, 1
        %s390 = scalar_select %p389, %s25, 1
        %s391 = smul.addr %s390, 16
        %s392 = smul.addr %s391, 8
        %s393 = scalar_lea.vmem %s3, %s392
      $region52: #{physics_deepwave_forward.3} parent=35 // pred_fallthru
        _
      // Predicated region
      $region53: #{physics_deepwave_forward.3} parent=35 // pred_check
        %p394 = pneg %p156
      $region54: #{physics_deepwave_forward.3} parent=35 // pred_check_branch
        %396 = sbr.rel (%p394) target = $region56
      $region55: #{physics_deepwave_forward.3} parent=35 // pred_region
        %p397 = scmp.lt.s32.totalorder %s25, 1
        %s398 = scalar_select %p397, %s25, 1
        %s399 = smul.addr %s398, 2
        %s400 = smul.addr %s399, 8
        %s401 = scalar_lea.vmem %s4, %s400
      $region56: #{physics_deepwave_forward.3} parent=35 // pred_fallthru
        _
    $region36: #{physics_deepwave_forward.3} parent=5 // pred_fallthru
      _
    %p402 = scmp.le.s32.totalorder 1, %s18
    %p403 = scmp.lt.s32.totalorder %s18, 3
    %p404 = pnand %p402, %p403
    %p405 = pneg %p404
    // Predicated region
    $region57: #{physics_deepwave_forward.3} parent=5 // pred_check
      _
    $region58: #{physics_deepwave_forward.3} parent=5 // pred_check_branch
      %407 = sbr.rel (%p404) target = $region60
    $region59: #{physics_deepwave_forward.3} parent=5 // pred_region
      %s408 = ssub.s32 %s18, 1
      %s409 = smul.u32 4, %s28
      %p410 = scmp.lt.s32.totalorder %s27, 1
      %s411 = scalar_select %p410, %s27, 1
      %p412 = scmp.lt.s32.totalorder %s409, 3
      %s413 = scalar_select %p412, %s409, 3
      %s414 = smul.addr %s411, 4
      %s415 = sadd.s32 %s413, %s414
      %s416 = smul.addr %s415, 8
      %s417 = scalar_lea.vmem %s0, %s416
      %p418 = pneg %p58
      %p419 = pneg %p55
      %p420 = scmp.lt.s32.totalorder %s27, 1
      %s421 = scalar_select %p420, %s27, 1
      %s422 = smul.addr %s421, 2
      %s423 = smul.addr %s422, 8
      %s424 = scalar_lea.vmem %s1, %s423
      %p425 = pneg %p84
      %p426 = pneg %p81
      %p427 = scmp.lt.s32.totalorder %s27, 1
      %s428 = scalar_select %p427, %s27, 1
      %s429 = smul.addr %s428, 16
      %s430 = smul.addr %s429, 8
      %s431 = scalar_lea.vmem %s2, %s430
      %p432 = pneg %p110
      %p433 = pneg %p107
      %p434 = scmp.lt.s32.totalorder %s27, 1
      %s435 = scalar_select %p434, %s27, 1
      %s436 = smul.addr %s435, 16
      %s437 = smul.addr %s436, 8
      %s438 = scalar_lea.vmem %s3, %s437
      %p439 = pneg %p136
      %p440 = pneg %p133
      %p441 = scmp.lt.s32.totalorder %s27, 1
      %s442 = scalar_select %p441, %s27, 1
      %s443 = smul.addr %s442, 2
      %s444 = smul.addr %s443, 8
      %s445 = scalar_lea.vmem %s4, %s444
      %p446 = pneg %p162
      %p447 = pneg %p159
      %p448 = pneg %p183
      %p449 = pneg %p180
      %p450 = pneg %p204
      %p451 = pneg %p201
      %p452 = pneg %p225
      %p453 = pneg %p222
      %p454 = pneg %p246
      %p455 = pneg %p243
      %p456 = pneg %p267
      %p457 = pneg %p264
      %p458 = pneg %p295
      %p459 = pneg %p292
      %s460 = smul.u32 4, %s28
      %p461 = scmp.lt.s32.totalorder %s27, 1
      %s462 = scalar_select %p461, %s27, 1
      %p463 = scmp.lt.s32.totalorder %s460, 3
      %s464 = scalar_select %p463, %s460, 3
      %s465 = smul.addr %s462, 4
      %s466 = sadd.s32 %s464, %s465
      %s467 = smul.addr %s466, 8
      %s468 = scalar_lea.vmem %s10, %s467
      %p469 = pneg %p323
      %p470 = pneg %p320
      %s471 = smul.u32 4, %s28
      %p472 = scmp.lt.s32.totalorder %s27, 1
      %s473 = scalar_select %p472, %s27, 1
      %p474 = scmp.lt.s32.totalorder %s471, 3
      %s475 = scalar_select %p474, %s471, 3
      %s476 = smul.addr %s473, 4
      %s477 = sadd.s32 %s475, %s476
      %s478 = smul.addr %s477, 8
      %s479 = scalar_lea.vmem %s11, %s478
      %s480 = smul.u32 4, %s28
      %p481 = scmp.lt.s32.totalorder %s27, 1
      %s482 = scalar_select %p481, %s27, 1
      %p483 = scmp.lt.s32.totalorder %s480, 3
      %s484 = scalar_select %p483, %s480, 3
      %s485 = smul.addr %s482, 4
      %s486 = sadd.s32 %s484, %s485
      %s487 = smul.addr %s486, 8
      %s488 = scalar_lea.vmem %s0, %s487
      %s489 = smul.u32 4, %s28
      %p490 = scmp.lt.s32.totalorder %s27, 1
      %s491 = scalar_select %p490, %s27, 1
      %s492 = smul.addr %s491, 2
      %s493 = smul.addr %s492, 8
      %s494 = scalar_lea.vmem %s1, %s493
      %p495 = scmp.lt.s32.totalorder %s27, 1
      %s496 = scalar_select %p495, %s27, 1
      %s497 = smul.addr %s496, 16
      %s498 = smul.addr %s497, 8
      %s499 = scalar_lea.vmem %s2, %s498
      %p500 = scmp.lt.s32.totalorder %s27, 1
      %s501 = scalar_select %p500, %s27, 1
      %s502 = smul.addr %s501, 16
      %s503 = smul.addr %s502, 8
      %s504 = scalar_lea.vmem %s3, %s503
      %p505 = scmp.lt.s32.totalorder %s27, 1
      %s506 = scalar_select %p505, %s27, 1
      %s507 = smul.addr %s506, 2
      %s508 = smul.addr %s507, 8
      %s509 = scalar_lea.vmem %s4, %s508
      %s510 = smul.u32 4, %s28
      %p511 = scmp.lt.s32.totalorder %s27, 1
      %s512 = scalar_select %p511, %s27, 1
      %p513 = scmp.lt.s32.totalorder %s510, 3
      %s514 = scalar_select %p513, %s510, 3
      %s515 = smul.addr %s512, 4
      %s516 = sadd.s32 %s514, %s515
      %s517 = smul.addr %s516, 8
      %s518 = scalar_lea.vmem %s10, %s517
      %s519 = smul.u32 4, %s28
      %s520 = smul.u32 4, %s28
      %p521 = scmp.lt.s32.totalorder %s27, 1
      %s522 = scalar_select %p521, %s27, 1
      %p523 = scmp.lt.s32.totalorder %s520, 3
      %s524 = scalar_select %p523, %s520, 3
      %s525 = smul.addr %s522, 4
      %s526 = sadd.s32 %s524, %s525
      %s527 = smul.addr %s526, 8
      %s528 = scalar_lea.vmem %s11, %s527
      %s529 = smul.u32 4, %s28
      %p530 = scmp.eq.s32.totalorder %s28, 0
      // Predicated region
      $region61: #{physics_deepwave_forward.3} parent=59 // pred_check
        %p531 = pneg %p530
      $region62: #{physics_deepwave_forward.3} parent=59 // pred_check_branch
        %533 = sbr.rel (%p531) target = $region64
      $region63: #{physics_deepwave_forward.3} parent=59 // pred_region
        %534 = vst [vmem:[#allocation2] sm:$0xff] 0.0
        %535 = vst [vmem:[#allocation2 + $0x8] sm:$0xff] 0.0
        %536 = vst [vmem:[#allocation3] sm:$0xff] 0.0
        %537 = vst [vmem:[#allocation3 + $0x8] sm:$0xff] 0.0
        %538 = vst [vmem:[#allocation4] sm:$0xff] 0.0
        %539 = vst [vmem:[#allocation4 + $0x8] sm:$0xff] 0.0
        %540 = vst [vmem:[#allocation5] sm:$0xff] 0.0
        %541 = vst [vmem:[#allocation5 + $0x8] sm:$0xff] 0.0
        %542 = vst [vmem:[#allocation6] sm:$0xff] 0.0
        %543 = vst [vmem:[#allocation6 + $0x8] sm:$0xff] 0.0
      $region64: #{physics_deepwave_forward.3} parent=59 // pred_fallthru
        _
      %v544 = vlaneseq
      %v545 = vand.u32 %v544, 127
      %v546 = vlaneseq
      %v547 = vshrl.u32 %v546, 7
      %v548 = vadd.s32 %v547, 8
      %vm549 = vcmp.lt.s32.totalorder %v545, 127
      %v550 = vsel %vm549, 1, 0
      %v551 = vcvt.s32.f32 %v550
      %vm552 = vcmp.ge.s32.totalorder %v545, 1
      %v553 = vsel %vm552, 1, 0
      %v554 = vcvt.s32.f32 %v553
      %vm555 = vcmp.lt.s32.totalorder %v547, 15
      %vm556 = vcmp.lt.s32.totalorder %v548, 15
      %v557 = vsel %vm555, 1, 0
      %v558 = vsel %vm556, 1, 0
      %v559 = vcvt.s32.f32 %v557
      %v560 = vcvt.s32.f32 %v558
      %vm561 = vcmp.ge.s32.totalorder %v547, 1
      %vm562 = vcmp.ge.s32.totalorder %v548, 1
      %v563 = vsel %vm561, 1, 0
      %v564 = vsel %vm562, 1, 0
      %v565 = vcvt.s32.f32 %v563
      %v566 = vcvt.s32.f32 %v564
      loop: start=0, step=1, limit=32
      $region65: #{physics_deepwave_forward.3} parent=59 // loop_pre_header
        _
      $region66: #{physics_deepwave_forward.3} parent=59 // loop_header
        %s568 = sphi 0, %s572
        %p569 = scmp.ge.s32.totalorder %s568, 32
      $region67: #{physics_deepwave_forward.3} parent=59 // loop_header_branch
        %571 = sbr.rel (%p569) target = $region71
      $region68: #{physics_deepwave_forward.3} parent=59 // loop_body
        %v573 = vld [vmem:[%s5] sm:$0xff]
        %v574 = vld [vmem:[%s5 + $0x8] sm:$0xff]
        %v575 = vld [vmem:[%s6] sm:$0xff]
        %v576 = vld [vmem:[%s6 + $0x8] sm:$0xff]
        %v577 = vld [vmem:[%s7] sm:$0xff]
        %v578 = vld [vmem:[%s7 + $0x8] sm:$0xff]
        %v579 = vld [vmem:[%s8] sm:$0xff]
        %v580 = vld [vmem:[%s8 + $0x8] sm:$0xff]
        %v581 = vld [vmem:[%s9] sm:$0xff]
        %v582 = vld [vmem:[%s9 + $0x8] sm:$0xff]
        %v583 = vld [vmem:[#allocation2] sm:$0xff]
        %v584 = vld [vmem:[#allocation2 + $0x8] sm:$0xff]
        %v585 = vld [vmem:[#allocation3] sm:$0xff]
        %v586 = vld [vmem:[#allocation3 + $0x8] sm:$0xff]
        %v587 = vld [vmem:[#allocation4] sm:$0xff]
        %v588 = vld [vmem:[#allocation4 + $0x8] sm:$0xff]
        %v589 = vld [vmem:[#allocation5] sm:$0xff]
        %v590 = vld [vmem:[#allocation5 + $0x8] sm:$0xff]
        %v591 = vld [vmem:[#allocation6] sm:$0xff]
        %v592 = vld [vmem:[#allocation6 + $0x8] sm:$0xff]
        %s593 = scalar_lea.vmem %s488, %s568
        %v594 = vld [vmem:[%s593] sm:$0x1]
        %v595 = vld [vmem:[%s494] sm:$0xff]
        %v596 = vld [vmem:[%s494 + $0x8] sm:$0xff]
        %v597 = vlaneseq
        %v598 = vshrl.u32 %v597, 7
        %v599 = vsub.s32 0, %v598
        %v600 = vrot.slane %v594, %v599
        %v601 = vmul.f32 %v595, %v600
        %v602 = vmul.f32 %v596, %v600
        %v603 = vld [vmem:[%s499] sm:$0xff]
        %v604 = vld [vmem:[%s499 + $0x8] sm:$0xff]
        %v605 = vld [vmem:[%s499 + $0x10] sm:$0xff]
        %v606 = vld [vmem:[%s499 + $0x18] sm:$0xff]
        %v607 = vld [vmem:[%s499 + $0x20] sm:$0xff]
        %v608 = vld [vmem:[%s499 + $0x28] sm:$0xff]
        %v609 = vld [vmem:[%s499 + $0x30] sm:$0xff]
        %v610 = vld [vmem:[%s499 + $0x38] sm:$0xff]
        %v611 = vld [vmem:[%s499 + $0x40] sm:$0xff]
        %v612 = vld [vmem:[%s499 + $0x48] sm:$0xff]
        %v613 = vld [vmem:[%s499 + $0x50] sm:$0xff]
        %v614 = vld [vmem:[%s499 + $0x58] sm:$0xff]
        %v615 = vld [vmem:[%s499 + $0x60] sm:$0xff]
        %v616 = vld [vmem:[%s499 + $0x68] sm:$0xff]
        %v617 = vld [vmem:[%s499 + $0x70] sm:$0xff]
        %v618 = vld [vmem:[%s499 + $0x78] sm:$0xff]
        %619 = vmatprep.subr.mxu0 0.0
        %620 = vmatpush1.msra.mxu0 %v603
        %621 = vmatprep.subr.mxu0 0.0
        %622 = vmatpush1.msra.mxu0 %v604
        %623 = vmatprep.subr.mxu0 0.0
        %624 = vmatpush1.msra.mxu0 %v605
        %625 = vmatprep.subr.mxu0 0.0
        %626 = vmatpush1.msra.mxu0 %v606
        %627 = vmatprep.subr.mxu0 0.0
        %628 = vmatpush1.msra.mxu0 %v607
        %629 = vmatprep.subr.mxu0 0.0
        %630 = vmatpush1.msra.mxu0 %v608
        %631 = vmatprep.subr.mxu0 0.0
        %632 = vmatpush1.msra.mxu0 %v609
        %633 = vmatprep.subr.mxu0 0.0
        %634 = vmatpush1.msra.mxu0 %v610
        %635 = vmatprep.subr.mxu0 0.0
        %636 = vmatpush1.msra.mxu0 %v611
        %637 = vmatprep.subr.mxu0 0.0
        %638 = vmatpush1.msra.mxu0 %v612
        %639 = vmatprep.subr.mxu0 0.0
        %640 = vmatpush1.msra.mxu0 %v613
        %641 = vmatprep.subr.mxu0 0.0
        %642 = vmatpush1.msra.mxu0 %v614
        %643 = vmatprep.subr.mxu0 0.0
        %644 = vmatpush1.msra.mxu0 %v615
        %645 = vmatprep.subr.mxu0 0.0
        %646 = vmatpush1.msra.mxu0 %v616
        %647 = vmatprep.subr.mxu0 0.0
        %648 = vmatpush1.msra.mxu0 %v617
        %649 = vmatprep.subr.mxu0 0.0
        %650 = vmatpush1.msra.mxu0 %v618
        %651 = vmatprep.subr.mxu0 0.0
        %652 = vmatpush1.msra.mxu0 0.0
        %653 = vmatprep.subr.mxu0 0.0
        %654 = vmatpush1.msra.mxu0 0.0
        %655 = vmatprep.subr.mxu0 0.0
        %656 = vmatpush1.msra.mxu0 0.0
        %657 = vmatprep.subr.mxu0 0.0
        %658 = vmatpush1.msra.mxu0 0.0
        %659 = vmatprep.subr.mxu0 0.0
        %660 = vmatpush1.msra.mxu0 0.0
        %661 = vmatprep.subr.mxu0 0.0
        %662 = vmatpush1.msra.mxu0 0.0
        %663 = vmatprep.subr.mxu0 0.0
        %664 = vmatpush1.msra.mxu0 0.0
        %665 = vmatprep.subr.mxu0 0.0
        %666 = vmatpush1.msra.mxu0 0.0
        %667 = vmatprep.subr.mxu0 0.0
        %668 = vmatpush1.msra.mxu0 0.0
        %669 = vmatprep.subr.mxu0 0.0
        %670 = vmatpush1.msra.mxu0 0.0
        %671 = vmatprep.subr.mxu0 0.0
        %672 = vmatpush1.msra.mxu0 0.0
        %673 = vmatprep.subr.mxu0 0.0
        %674 = vmatpush1.msra.mxu0 0.0
        %675 = vmatprep.subr.mxu0 0.0
        %676 = vmatpush1.msra.mxu0 0.0
        %677 = vmatprep.subr.mxu0 0.0
        %678 = vmatpush1.msra.mxu0 0.0
        %679 = vmatprep.subr.mxu0 0.0
        %680 = vmatpush1.msra.mxu0 0.0
        %681 = vmatprep.subr.mxu0 0.0
        %682 = vmatpush1.msra.mxu0 0.0
        %683 = vmatprep.mubr.f32.mxu0 0.0
        %684 = vmatmul.mubr.f32.gmra.mrb[0].mxu0 %v601
        %v685 = vpop.f32.mrb[0].mxu0
        %v686 = vadd.f32 0.0, %v685
        %v687 = vpop.f32.mrb[0].mxu0
        %688 = vmatprep.mubr.f32.mxu0 0.0
        %689 = vmatmul.mubr.f32.gmra.mrb[0].mxu0 %v602
        %v690 = vpop.f32.mrb[0].mxu0
        %v691 = vadd.f32 0.0, %v690
        %v692 = vpop.f32.mrb[0].mxu0
        %693 = vdwg.mxu0
        %v694 = vrot.slane %v587, 7
        %v695 = vrot.slane %v588, 7
        %vm696 = vcmp.lt.s32.totalorder %v547, 1
        %v697 = vsel %vm696, %v694, %v695
        %v698 = vsel %vm696, %v695, %v694
        %v699 = vmul.f32 %v698, %v565
        %v700 = vmul.f32 %v697, %v566
        %v701 = vsub.f32 %v587, %v699
        %v702 = vsub.f32 %v588, %v700
        %703 = vrot.lane.b32.xlu0 %v591, 127
        %v704 = vpop.permute.xlu0 %703
        %705 = vrot.lane.b32.xlu0 %v592, 127
        %v706 = vpop.permute.xlu0 %705
        %v707 = vmul.f32 %v704, %v551
        %v708 = vmul.f32 %v706, %v551
        %v709 = vsub.f32 %v707, %v591
        %v710 = vsub.f32 %v708, %v592
        %v711 = vadd.f32 %v701, %v709
        %v712 = vadd.f32 %v702, %v710
        %v713 = vmul.f32 %v573, %v711
        %v714 = vmul.f32 %v574, %v712
        %v715 = vadd.f32 %v583, %v713
        %v716 = vadd.f32 %v584, %v714
        %v717 = vmul.f32 %v581, %v715
        %v718 = vmul.f32 %v582, %v716
        %v719 = vadd.f32 %v717, %v686
        %v720 = vadd.f32 %v718, %v691
        %721 = vrot.lane.b32.xlu0 %v589, 1
        %v722 = vpop.permute.xlu0 %721
        %723 = vrot.lane.b32.xlu0 %v590, 1
        %v724 = vpop.permute.xlu0 %723
        %v725 = vmul.f32 %v722, %v554
        %v726 = vmul.f32 %v724, %v554
        %v727 = vsub.f32 %v589, %v725
        %v728 = vsub.f32 %v590, %v726
        %v729 = vrot.slane %v591, 1
        %v730 = vrot.slane %v592, 1
        %vm731 = vcmp.lt.s32.totalorder %v547, 7
        %v732 = vsel %vm731, %v729, %v730
        %v733 = vsel %vm731, %v730, %v729
        %v734 = vmul.f32 %v732, %v559
        %v735 = vmul.f32 %v733, %v560
        %v736 = vsub.f32 %v734, %v591
        %v737 = vsub.f32 %v735, %v592
        %v738 = vadd.f32 %v727, %v736
        %v739 = vadd.f32 %v728, %v737
        %v740 = vmul.f32 %v573, %v738
        %v741 = vmul.f32 %v574, %v739
        %v742 = vadd.f32 %v585, %v740
        %v743 = vadd.f32 %v586, %v741
        %v744 = vmul.f32 %v581, %v742
        %v745 = vmul.f32 %v582, %v743
        %v746 = vadd.f32 %v744, %v686
        %v747 = vadd.f32 %v745, %v691
        %748 = vrot.lane.b32.xlu0 %v746, 127
        %v749 = vpop.permute.xlu0 %748
        %750 = vrot.lane.b32.xlu0 %v747, 127
        %v751 = vpop.permute.xlu0 %750
        %v752 = vmul.f32 %v749, %v551
        %v753 = vmul.f32 %v751, %v551
        %v754 = vsub.f32 %v752, %v746
        %v755 = vsub.f32 %v753, %v747
        %v756 = vrot.slane %v719, 1
        %v757 = vrot.slane %v720, 1
        %v758 = vsel %vm731, %v756, %v757
        %v759 = vsel %vm731, %v757, %v756
        %v760 = vmul.f32 %v758, %v559
        %v761 = vmul.f32 %v759, %v560
        %v762 = vsub.f32 %v760, %v719
        %v763 = vsub.f32 %v761, %v720
        %v764 = vmul.f32 %v575, %v754
        %v765 = vmul.f32 %v576, %v755
        %v766 = vadd.f32 %v589, %v764
        %v767 = vadd.f32 %v590, %v765
        %v768 = vmul.f32 %v577, %v762
        %v769 = vmul.f32 %v578, %v763
        %v770 = vadd.f32 %v766, %v768
        %v771 = vadd.f32 %v767, %v769
        %v772 = vmul.f32 %v581, %v770
        %v773 = vmul.f32 %v582, %v771
        %v774 = vmul.f32 %v575, %v762
        %v775 = vmul.f32 %v576, %v763
        %v776 = vadd.f32 %v587, %v774
        %v777 = vadd.f32 %v588, %v775
        %v778 = vmul.f32 %v577, %v754
        %v779 = vmul.f32 %v578, %v755
        %v780 = vadd.f32 %v776, %v778
        %v781 = vadd.f32 %v777, %v779
        %v782 = vmul.f32 %v581, %v780
        %v783 = vmul.f32 %v582, %v781
        %v784 = vrot.slane %v746, 7
        %v785 = vrot.slane %v747, 7
        %v786 = vsel %vm696, %v784, %v785
        %v787 = vsel %vm696, %v785, %v784
        %v788 = vmul.f32 %v787, %v565
        %v789 = vmul.f32 %v786, %v566
        %v790 = vsub.f32 %v746, %v788
        %v791 = vsub.f32 %v747, %v789
        %792 = vrot.lane.b32.xlu0 %v719, 1
        %v793 = vpop.permute.xlu0 %792
        %794 = vrot.lane.b32.xlu0 %v720, 1
        %v795 = vpop.permute.xlu0 %794
        %v796 = vmul.f32 %v793, %v554
        %v797 = vmul.f32 %v795, %v554
        %v798 = vsub.f32 %v719, %v796
        %v799 = vsub.f32 %v720, %v797
        %v800 = vadd.f32 %v790, %v798
        %v801 = vadd.f32 %v791, %v799
        %v802 = vmul.f32 %v579, %v800
        %v803 = vmul.f32 %v580, %v801
        %v804 = vadd.f32 %v591, %v802
        %v805 = vadd.f32 %v592, %v803
        %v806 = vmul.f32 %v581, %v804
        %v807 = vmul.f32 %v582, %v805
        %808 = vst [vmem:[#allocation2] sm:$0xff] %v719
        %809 = vst [vmem:[#allocation2 + $0x8] sm:$0xff] %v720
        %810 = vst [vmem:[#allocation3] sm:$0xff] %v746
        %811 = vst [vmem:[#allocation3 + $0x8] sm:$0xff] %v747
        %812 = vst [vmem:[#allocation4] sm:$0xff] %v782
        %813 = vst [vmem:[#allocation4 + $0x8] sm:$0xff] %v783
        %814 = vst [vmem:[#allocation5] sm:$0xff] %v772
        %815 = vst [vmem:[#allocation5 + $0x8] sm:$0xff] %v773
        %816 = vst [vmem:[#allocation6] sm:$0xff] %v806
        %817 = vst [vmem:[#allocation6 + $0x8] sm:$0xff] %v807
        %v818 = vld [vmem:[%s504] sm:$0xff]
        %v819 = vld [vmem:[%s504 + $0x8] sm:$0xff]
        %v820 = vld [vmem:[%s504 + $0x10] sm:$0xff]
        %v821 = vld [vmem:[%s504 + $0x18] sm:$0xff]
        %v822 = vld [vmem:[%s504 + $0x20] sm:$0xff]
        %v823 = vld [vmem:[%s504 + $0x28] sm:$0xff]
        %v824 = vld [vmem:[%s504 + $0x30] sm:$0xff]
        %v825 = vld [vmem:[%s504 + $0x38] sm:$0xff]
        %v826 = vld [vmem:[%s504 + $0x40] sm:$0xff]
        %v827 = vld [vmem:[%s504 + $0x48] sm:$0xff]
        %v828 = vld [vmem:[%s504 + $0x50] sm:$0xff]
        %v829 = vld [vmem:[%s504 + $0x58] sm:$0xff]
        %v830 = vld [vmem:[%s504 + $0x60] sm:$0xff]
        %v831 = vld [vmem:[%s504 + $0x68] sm:$0xff]
        %v832 = vld [vmem:[%s504 + $0x70] sm:$0xff]
        %v833 = vld [vmem:[%s504 + $0x78] sm:$0xff]
        %v834 = vld [vmem:[%s509] sm:$0xff]
        %v835 = vld [vmem:[%s509 + $0x8] sm:$0xff]
        %836 = vmatprep.subr.mxu0 0.0
        %837 = vmatpush1.msra.mxu0 %v818
        %838 = vmatprep.subr.mxu0 0.0
        %839 = vmatpush1.msra.mxu0 %v819
        %840 = vmatprep.subr.mxu0 0.0
        %841 = vmatpush1.msra.mxu0 %v820
        %842 = vmatprep.subr.mxu0 0.0
        %843 = vmatpush1.msra.mxu0 %v821
        %844 = vmatprep.subr.mxu0 0.0
        %845 = vmatpush1.msra.mxu0 %v822
        %846 = vmatprep.subr.mxu0 0.0
        %847 = vmatpush1.msra.mxu0 %v823
        %848 = vmatprep.subr.mxu0 0.0
        %849 = vmatpush1.msra.mxu0 %v824
        %850 = vmatprep.subr.mxu0 0.0
        %851 = vmatpush1.msra.mxu0 %v825
        %852 = vmatprep.subr.mxu0 0.0
        %853 = vmatpush1.msra.mxu0 %v826
        %854 = vmatprep.subr.mxu0 0.0
        %855 = vmatpush1.msra.mxu0 %v827
        %856 = vmatprep.subr.mxu0 0.0
        %857 = vmatpush1.msra.mxu0 %v828
        %858 = vmatprep.subr.mxu0 0.0
        %859 = vmatpush1.msra.mxu0 %v829
        %860 = vmatprep.subr.mxu0 0.0
        %861 = vmatpush1.msra.mxu0 %v830
        %862 = vmatprep.subr.mxu0 0.0
        %863 = vmatpush1.msra.mxu0 %v831
        %864 = vmatprep.subr.mxu0 0.0
        %865 = vmatpush1.msra.mxu0 %v832
        %866 = vmatprep.subr.mxu0 0.0
        %867 = vmatpush1.msra.mxu0 %v833
        %868 = vmatprep.subr.mxu0 0.0
        %869 = vmatpush1.msra.mxu0 0.0
        %870 = vmatprep.subr.mxu0 0.0
        %871 = vmatpush1.msra.mxu0 0.0
        %872 = vmatprep.subr.mxu0 0.0
        %873 = vmatpush1.msra.mxu0 0.0
        %874 = vmatprep.subr.mxu0 0.0
        %875 = vmatpush1.msra.mxu0 0.0
        %876 = vmatprep.subr.mxu0 0.0
        %877 = vmatpush1.msra.mxu0 0.0
        %878 = vmatprep.subr.mxu0 0.0
        %879 = vmatpush1.msra.mxu0 0.0
        %880 = vmatprep.subr.mxu0 0.0
        %881 = vmatpush1.msra.mxu0 0.0
        %882 = vmatprep.subr.mxu0 0.0
        %883 = vmatpush1.msra.mxu0 0.0
        %884 = vmatprep.subr.mxu0 0.0
        %885 = vmatpush1.msra.mxu0 0.0
        %886 = vmatprep.subr.mxu0 0.0
        %887 = vmatpush1.msra.mxu0 0.0
        %888 = vmatprep.subr.mxu0 0.0
        %889 = vmatpush1.msra.mxu0 0.0
        %890 = vmatprep.subr.mxu0 0.0
        %891 = vmatpush1.msra.mxu0 0.0
        %892 = vmatprep.subr.mxu0 0.0
        %893 = vmatpush1.msra.mxu0 0.0
        %894 = vmatprep.subr.mxu0 0.0
        %895 = vmatpush1.msra.mxu0 0.0
        %896 = vmatprep.subr.mxu0 0.0
        %897 = vmatpush1.msra.mxu0 0.0
        %898 = vmatprep.subr.mxu0 0.0
        %899 = vmatpush1.msra.mxu0 0.0
        %900 = vmatprep.mubr.f32.mxu0 0.0
        %901 = vmatmul.mubr.f32.gmra.mrb[0].mxu0 %v719
        %v902 = vpop.f32.mrb[0].mxu0
        %v903 = vadd.f32 0.0, %v902
        %v904 = vpop.f32.mrb[0].mxu0
        %905 = vmatprep.mubr.f32.mxu0 0.0
        %906 = vmatmul.mubr.f32.gmra.mrb[0].mxu0 %v720
        %v907 = vpop.f32.mrb[0].mxu0
        %v908 = vadd.f32 0.0, %v907
        %v909 = vpop.f32.mrb[0].mxu0
        %910 = vdwg.mxu0
        %911 = vmatprep.subr.mxu0 0.0
        %912 = vmatpush1.msra.mxu0 %v818
        %913 = vmatprep.subr.mxu0 0.0
        %914 = vmatpush1.msra.mxu0 %v819
        %915 = vmatprep.subr.mxu0 0.0
        %916 = vmatpush1.msra.mxu0 %v820
        %917 = vmatprep.subr.mxu0 0.0
        %918 = vmatpush1.msra.mxu0 %v821
        %919 = vmatprep.subr.mxu0 0.0
        %920 = vmatpush1.msra.mxu0 %v822
        %921 = vmatprep.subr.mxu0 0.0
        %922 = vmatpush1.msra.mxu0 %v823
        %923 = vmatprep.subr.mxu0 0.0
        %924 = vmatpush1.msra.mxu0 %v824
        %925 = vmatprep.subr.mxu0 0.0
        %926 = vmatpush1.msra.mxu0 %v825
        %927 = vmatprep.subr.mxu0 0.0
        %928 = vmatpush1.msra.mxu0 %v826
        %929 = vmatprep.subr.mxu0 0.0
        %930 = vmatpush1.msra.mxu0 %v827
        %931 = vmatprep.subr.mxu0 0.0
        %932 = vmatpush1.msra.mxu0 %v828
        %933 = vmatprep.subr.mxu0 0.0
        %934 = vmatpush1.msra.mxu0 %v829
        %935 = vmatprep.subr.mxu0 0.0
        %936 = vmatpush1.msra.mxu0 %v830
        %937 = vmatprep.subr.mxu0 0.0
        %938 = vmatpush1.msra.mxu0 %v831
        %939 = vmatprep.subr.mxu0 0.0
        %940 = vmatpush1.msra.mxu0 %v832
        %941 = vmatprep.subr.mxu0 0.0
        %942 = vmatpush1.msra.mxu0 %v833
        %943 = vmatprep.subr.mxu0 0.0
        %944 = vmatpush1.msra.mxu0 0.0
        %945 = vmatprep.subr.mxu0 0.0
        %946 = vmatpush1.msra.mxu0 0.0
        %947 = vmatprep.subr.mxu0 0.0
        %948 = vmatpush1.msra.mxu0 0.0
        %949 = vmatprep.subr.mxu0 0.0
        %950 = vmatpush1.msra.mxu0 0.0
        %951 = vmatprep.subr.mxu0 0.0
        %952 = vmatpush1.msra.mxu0 0.0
        %953 = vmatprep.subr.mxu0 0.0
        %954 = vmatpush1.msra.mxu0 0.0
        %955 = vmatprep.subr.mxu0 0.0
        %956 = vmatpush1.msra.mxu0 0.0
        %957 = vmatprep.subr.mxu0 0.0
        %958 = vmatpush1.msra.mxu0 0.0
        %959 = vmatprep.subr.mxu0 0.0
        %960 = vmatpush1.msra.mxu0 0.0
        %961 = vmatprep.subr.mxu0 0.0
        %962 = vmatpush1.msra.mxu0 0.0
        %963 = vmatprep.subr.mxu0 0.0
        %964 = vmatpush1.msra.mxu0 0.0
        %965 = vmatprep.subr.mxu0 0.0
        %966 = vmatpush1.msra.mxu0 0.0
        %967 = vmatprep.subr.mxu0 0.0
        %968 = vmatpush1.msra.mxu0 0.0
        %969 = vmatprep.subr.mxu0 0.0
        %970 = vmatpush1.msra.mxu0 0.0
        %971 = vmatprep.subr.mxu0 0.0
        %972 = vmatpush1.msra.mxu0 0.0
        %973 = vmatprep.subr.mxu0 0.0
        %974 = vmatpush1.msra.mxu0 0.0
        %975 = vmatprep.mubr.f32.mxu0 0.0
        %976 = vmatmul.mubr.f32.gmra.mrb[0].mxu0 %v746
        %v977 = vpop.f32.mrb[0].mxu0
        %v978 = vadd.f32 0.0, %v977
        %v979 = vpop.f32.mrb[0].mxu0
        %980 = vmatprep.mubr.f32.mxu0 0.0
        %981 = vmatmul.mubr.f32.gmra.mrb[0].mxu0 %v747
        %v982 = vpop.f32.mrb[0].mxu0
        %v983 = vadd.f32 0.0, %v982
        %v984 = vpop.f32.mrb[0].mxu0
        %985 = vdwg.mxu0
        %v986 = vmul.f32 %v903, %v834
        %v987 = vmul.f32 %v908, %v835
        %v988 = vadd.f32 %v986, %v987
        %v989 = vrot.slane %v988, 4
        %v990 = vadd.f32 %v988, %v989
        %v991 = vrot.slane %v990, 2
        %v992 = vadd.f32 %v990, %v991
        %v993 = vrot.slane %v992, 1
        %v994 = vadd.f32 %v992, %v993
        %s995 = scalar_lea.vmem %s518, %s568
        %996 = vst [vmem:[%s995] sm:$0x1] %v994
        %v997 = vmul.f32 %v978, %v834
        %v998 = vmul.f32 %v983, %v835
        %v999 = vadd.f32 %v997, %v998
        %v1000 = vrot.slane %v999, 4
        %v1001 = vadd.f32 %v999, %v1000
        %v1002 = vrot.slane %v1001, 2
        %v1003 = vadd.f32 %v1001, %v1002
        %v1004 = vrot.slane %v1003, 1
        %v1005 = vadd.f32 %v1003, %v1004
        %s1006 = scalar_lea.vmem %s528, %s568
        %1007 = vst [vmem:[%s1006] sm:$0x1] %v1005
      $region69: #{physics_deepwave_forward.3} parent=59 // loop_footer
        %s572 = sadd.s32 1, %s568
      $region70: #{physics_deepwave_forward.3} parent=59 // loop_footer_branch
        %567 = sbr.rel target = $region66
      $region71: #{physics_deepwave_forward.3} parent=59 // loop_exit
        _
      %s1008 = smul.u32 4, %s28
      %p1009 = scmp.lt.s32.totalorder %s27, 1
      %s1010 = scalar_select %p1009, %s27, 1
      %p1011 = scmp.lt.s32.totalorder %s1008, 3
      %s1012 = scalar_select %p1011, %s1008, 3
      %s1013 = smul.addr %s1010, 4
      %s1014 = sadd.s32 %s1012, %s1013
      %s1015 = smul.addr %s1014, 8
      %s1016 = scalar_lea.vmem %s10, %s1015
      %s1017 = smul.u32 4, %s28
      %p1018 = scmp.lt.s32.totalorder %s27, 1
      %s1019 = scalar_select %p1018, %s27, 1
      %p1020 = scmp.lt.s32.totalorder %s1017, 3
      %s1021 = scalar_select %p1020, %s1017, 3
      %s1022 = smul.addr %s1019, 4
      %s1023 = sadd.s32 %s1021, %s1022
      %s1024 = smul.addr %s1023, 8
      %s1025 = scalar_lea.vmem %s11, %s1024
      // Predicated region
      $region72: #{physics_deepwave_forward.3} parent=59 // pred_check
        %p1026 = pneg %p292
      $region73: #{physics_deepwave_forward.3} parent=59 // pred_check_branch
        %1028 = sbr.rel (%p1026) target = $region75
      $region74: #{physics_deepwave_forward.3} parent=59 // pred_region
        %s1029 = smul.u32 4, %s28
      $region75: #{physics_deepwave_forward.3} parent=59 // pred_fallthru
        _
      // Predicated region
      $region76: #{physics_deepwave_forward.3} parent=59 // pred_check
        %p1030 = pneg %p320
      $region77: #{physics_deepwave_forward.3} parent=59 // pred_check_branch
        %1032 = sbr.rel (%p1030) target = $region79
      $region78: #{physics_deepwave_forward.3} parent=59 // pred_region
        %s1033 = smul.u32 4, %s28
      $region79: #{physics_deepwave_forward.3} parent=59 // pred_fallthru
        _
    $region60: #{physics_deepwave_forward.3} parent=5 // pred_fallthru
      _
    %p1034 = scmp.le.s32.totalorder 2, %s18
    // Predicated region
    $region80: #{physics_deepwave_forward.3} parent=5 // pred_check
      %p1035 = pneg %p1034
    $region81: #{physics_deepwave_forward.3} parent=5 // pred_check_branch
      %1037 = sbr.rel (%p1035) target = $region83
    $region82: #{physics_deepwave_forward.3} parent=5 // pred_region
      %s1038 = ssub.s32 %s18, 2
      // Predicated region
      $region84: #{physics_deepwave_forward.3} parent=82 // pred_check
        %p1039 = pneg %p298
      $region85: #{physics_deepwave_forward.3} parent=82 // pred_check_branch
        %1041 = sbr.rel (%p1039) target = $region87
      $region86: #{physics_deepwave_forward.3} parent=82 // pred_region
        %s1042 = smul.u32 4, %s30
        %p1043 = scmp.lt.s32.totalorder %s29, 1
        %s1044 = scalar_select %p1043, %s29, 1
        %p1045 = scmp.lt.s32.totalorder %s1042, 3
        %s1046 = scalar_select %p1045, %s1042, 3
        %s1047 = smul.addr %s1044, 4
        %s1048 = sadd.s32 %s1046, %s1047
        %s1049 = smul.addr %s1048, 8
        %s1050 = scalar_lea.vmem %s10, %s1049
      $region87: #{physics_deepwave_forward.3} parent=82 // pred_fallthru
        _
      // Predicated region
      $region88: #{physics_deepwave_forward.3} parent=82 // pred_check
        %p1051 = pneg %p326
      $region89: #{physics_deepwave_forward.3} parent=82 // pred_check_branch
        %1053 = sbr.rel (%p1051) target = $region91
      $region90: #{physics_deepwave_forward.3} parent=82 // pred_region
        %s1054 = smul.u32 4, %s30
        %p1055 = scmp.lt.s32.totalorder %s29, 1
        %s1056 = scalar_select %p1055, %s29, 1
        %p1057 = scmp.lt.s32.totalorder %s1054, 3
        %s1058 = scalar_select %p1057, %s1054, 3
        %s1059 = smul.addr %s1056, 4
        %s1060 = sadd.s32 %s1058, %s1059
        %s1061 = smul.addr %s1060, 8
        %s1062 = scalar_lea.vmem %s11, %s1061
      $region91: #{physics_deepwave_forward.3} parent=82 // pred_fallthru
        _
    $region83: #{physics_deepwave_forward.3} parent=5 // pred_fallthru
      _
  $region6: #{physics_deepwave_forward.3} parent=0 // loop_footer
    %s22 = sadd.s32 1, %s18
  $region7: #{physics_deepwave_forward.3} parent=0 // loop_footer_branch
    %17 = sbr.rel target = $region3
  $region8: #{physics_deepwave_forward.3} parent=0 // loop_exit
    _

</llo_original>
